<compile_context>
chip_gen: v5e
topology: v5e:2x2
jax: 0.10.0
libtpu: 0.0.40
codegen_flags: <defaults>
</compile_context>

<pallas_src>
import functools

import jax
import jax.numpy as jnp
from jax import lax
from jax.experimental import pallas as pl
from jax.experimental.pallas import tpu as pltpu


def _round_up(x, n):
    return ((x + n - 1) // n) * n


def _class_gram_kernel(x_ref, labels_ref, g_ref, acc_ref, *, num_classes):
    """Accumulate G_k = X^T diag(labels == k) X for all k over sample tiles.

    grid = (n_split, tiles_per_split):
      axis 0 ("parallel"): independent sample ranges -> independent output
        blocks (megacore-shardable on v7x; partials summed in the wrapper).
      axis 1 ("arbitrary"): trailing reduction over sample tiles.
    """
    i = pl.program_id(1)  # sample-tile index within this split (reduction axis)

    @pl.when(i == 0)
    def _():
        acc_ref[...] = jnp.zeros_like(acc_ref)

    x = x_ref[...]                               # (tm, p)  streamed once per tile
    lab = labels_ref[...]                        # (tm, 1)  int32 label column

    # Static loop over classes: the X tile is reused for every class; each
    # class costs one VPU compare+mask and one MXU contraction over samples.
    # TODO(synk): for large K / large p, group samples by class via scalar
    # prefetch (MoE pattern) and/or pack floor(256/p) classes per matmul to
    # fill the wide MXU; not needed at the memory-bound small-K regime here.
    for k in range(num_classes):
        mask_k = (lab == k).astype(x.dtype)      # (tm, 1), free VPU compare
        xm = x * mask_k                          # broadcast along lanes
        # Contract over the sample (sublane) axis: (tm,p)^T @ (tm,p) -> (p,p).
        acc_ref[k] += lax.dot_general(
            xm, x, (((0,), (0,)), ((), ())),
            preferred_element_type=jnp.float32)

    @pl.when(i == pl.num_programs(1) - 1)
    def _():
        g_ref[...] = acc_ref[...][None].astype(g_ref.dtype)


def _class_grams(X, Y, num_classes, *, tile_m=2048, compute_dtype=jnp.float32):
    """Return [K, p, p]: per-class Grams X^T diag(Y == k) X."""
    m, p = X.shape

    tm = min(_round_up(tile_m, 8), _round_up(m, 8))     # sublane-aligned tile
    n_tiles = pl.cdiv(m, tm)
    n_split = 2 if n_tiles >= 2 else 1                  # parallel axis for v7x megacore
    tiles_per_split = pl.cdiv(n_tiles, n_split)
    m_pad = n_split * tiles_per_split * tm

    x = X.astype(compute_dtype)
    if m_pad != m:
        # Zero rows contribute nothing; their labels (== num_classes) match no class.
        x = jnp.zeros((m_pad, p), compute_dtype).at[:m].set(x)
    labels = jnp.full((m_pad, 1), num_classes, jnp.int32)
    labels = labels.at[:m, 0].set(Y.astype(jnp.int32))

    # Explicit VMEM budget: double-buffered inputs + multi-class accumulator.
    itemsize = jnp.dtype(compute_dtype).itemsize
    lane_p, sub_p = _round_up(p, 128), _round_up(p, 8)
    vmem_need = (2 * tm * lane_p * itemsize              # X tile (double-buffered)
                 + 2 * tm * 128 * 4                      # label column (lane-padded)
                 + 3 * num_classes * sub_p * lane_p * 4)  # acc scratch + out block
    vmem_limit = int(min(max(2 * vmem_need, 32 * 1024 * 1024), 48 * 1024 * 1024))

    kernel = functools.partial(_class_gram_kernel, num_classes=num_classes)
    grams = pl.pallas_call(
        kernel,
        out_shape=jax.ShapeDtypeStruct((n_split, num_classes, p, p), jnp.float32),
        grid_spec=pltpu.PrefetchScalarGridSpec(
            num_scalar_prefetch=0,
            grid=(n_split, tiles_per_split),
            in_specs=[
                pl.BlockSpec((tm, p), lambda s, i: (s * tiles_per_split + i, 0)),
                pl.BlockSpec((tm, 1), lambda s, i: (s * tiles_per_split + i, 0)),
            ],
            out_specs=pl.BlockSpec((1, num_classes, p, p),
                                   lambda s, i: (s, 0, 0, 0)),
            scratch_shapes=[pltpu.VMEM((num_classes, p, p), jnp.float32)],
        ),
        compiler_params=pltpu.CompilerParams(
            dimension_semantics=("parallel", "arbitrary"),
            vmem_limit_bytes=vmem_limit),
    )(x, labels)

    return jnp.sum(grams, axis=0)            # sum the per-split partial Grams


@functools.partial(
    jax.jit, static_argnames=("num_classes", "tile_m", "compute_dtype"))
def mcr2_forward(X, Y, num_classes, gam1=1.0, gam2=1.0, eps=0.01,
                 tile_m=2048, compute_dtype=jnp.float32):
    """Forward of MaximalCodingRateReduction. X: [m, p], Y: [m] int labels."""
    # TODO(synk): PyTorch defaults num_classes = Y.max()+1 (data-dependent
    # shape); here num_classes must be supplied statically.
    m, p = X.shape
    counts = jnp.sum(jax.nn.one_hot(Y, num_classes, dtype=jnp.float32), axis=0)

    grams = _class_grams(X, Y, num_classes, tile_m=tile_m,
                         compute_dtype=compute_dtype)        # [K, p, p]
    # One-hot rows sum to 1 (padded rows match no class), so X^T X == sum_k G_k:
    # no extra all-ones pass over X is needed.
    gram_total = jnp.sum(grams, axis=0)                      # [p, p]

    eye = jnp.eye(p, dtype=jnp.float32)
    tr_pi = counts + 1e-8
    cls_scale = p / (tr_pi * eps)                            # [K]
    m_cls = eye[None] + cls_scale[:, None, None] * grams
    m_tot = eye + gam1 * (p / (m * eps)) * gram_total

    # logdet of small SPD matrices: done in XLA (no Pallas Cholesky primitive).
    logdet_cls = jnp.linalg.slogdet(m_cls)[1]                # [K]
    logdet_tot = jnp.linalg.slogdet(m_tot)[1]

    discrimn_loss = logdet_tot / 2.0
    compress_loss = jnp.sum(logdet_cls * tr_pi / m) / 2.0
    return gam2 * (-discrimn_loss) + compress_loss


def reference_forward(X, Y, num_classes, gam1=1.0, gam2=1.0, eps=0.01):
    """Plain-JAX transcription of the PyTorch module for sanity checking."""
    m, p = X.shape
    W = X.T.astype(jnp.float32)
    eye = jnp.eye(p, dtype=jnp.float32)
    onehot = jax.nn.one_hot(Y, num_classes, dtype=jnp.float32)

    discrimn = jnp.linalg.slogdet(
        eye + gam1 * (p / (m * eps)) * W @ W.T)[1] / 2.0
    compress = 0.0
    for j in range(num_classes):
        pi_j = jnp.diag(onehot[:, j])
        tr = jnp.trace(pi_j) + 1e-8
        ld = jnp.linalg.slogdet(eye + (p / (tr * eps)) * W @ pi_j @ W.T)[1]
        compress = compress + ld * tr / m
    compress = compress / 2.0
    return gam2 * (-discrimn) + compress


if __name__ == "__main__":
    m, p, num_classes = 256, 32, 4

    key = jax.random.PRNGKey(0)
    kx, ky = jax.random.split(key)
    X = jax.random.normal(kx, (m, p), jnp.float32)
    Y = jax.random.randint(ky, (m,), 0, num_classes, jnp.int32)

    ref = reference_forward(X, Y, num_classes)

    # tile_m=64 -> 4 sample tiles split as 2 (parallel) x 2 (reduction),
    # exercising both the megacore split and the in-kernel accumulation path.
    loss = mcr2_forward(X, Y, num_classes, tile_m=64)
    jax.block_until_ready(loss)
    assert bool(jnp.isfinite(loss)), loss
    assert jnp.allclose(loss, ref, atol=3e-3, rtol=1e-3), (loss, ref)

    # Default large-tile path (single tile / single split at this small m).
    loss2 = mcr2_forward(X, Y, num_classes)
    jax.block_until_ready(loss2)
    assert jnp.allclose(loss2, ref, atol=3e-3, rtol=1e-3), (loss2, ref)

    print("KERNEL_OK")
</pallas_src>

<mosaic_0001>
module attributes {stable_mosaic.version = 11 : i64} {
  func.func @_class_gram_kernel(%arg0: i32, %arg1: i32, %arg2: memref<64x32xf32, #tpu.memory_space<vmem>>, %arg3: memref<64x1xi32, #tpu.memory_space<vmem>>, %arg4: memref<1x4x32x32xf32, #tpu.memory_space<vmem>>, %arg5: memref<4x32x32xf32, #tpu.memory_space<vmem>>) attributes {dimension_semantics = [#tpu.dimension_semantics<parallel>, #tpu.dimension_semantics<arbitrary>], iteration_bounds = array<i64: 2, 2>, scalar_prefetch = 0 : i64, scratch_operands = 1 : i64, tpu.core_type = #tpu.core_type<tc>, window_params = [{transform_indices = @transform_0, window_bounds = array<i64: 64, 32>}, {transform_indices = @transform_1, window_bounds = array<i64: 64, 1>}, {transform_indices = @transform_2, window_bounds = array<i64: 1, 4, 32, 32>}]} {
    %c0_i32 = arith.constant 0 : i32
    %0 = arith.cmpi eq, %arg1, %c0_i32 : i32
    %1 = arith.extui %0 : i1 to i32
    %c0_i32_0 = arith.constant 0 : i32
    %2 = arith.cmpi ne, %1, %c0_i32_0 : i32
    scf.if %2 {
      %cst_31 = arith.constant 0.000000e+00 : f32
      %60 = vector.broadcast %cst_31 : f32 to vector<4x32x32xf32>
      %c0_32 = arith.constant 0 : index
      %c0_33 = arith.constant 0 : index
      %c0_34 = arith.constant 0 : index
      %61 = vector.load %arg5[%c0_32, %c0_33, %c0_34] : memref<4x32x32xf32, #tpu.memory_space<vmem>>, vector<4x32x32xf32>
      tpu.vector_store %arg5[%c0_32, %c0_33, %c0_34], %60 {strides = array<i32>} : memref<4x32x32xf32, #tpu.memory_space<vmem>>, vector<4x32x32xf32>,
    } else {
    }
    %c0 = arith.constant 0 : index
    %c0_1 = arith.constant 0 : index
    %3 = vector.load %arg2[%c0, %c0_1] : memref<64x32xf32, #tpu.memory_space<vmem>>, vector<64x32xf32>
    %c0_2 = arith.constant 0 : index
    %c0_3 = arith.constant 0 : index
    %4 = vector.load %arg3[%c0_2, %c0_3] : memref<64x1xi32, #tpu.memory_space<vmem>>, vector<64x1xi32>
    %c0_i32_4 = arith.constant 0 : i32
    %5 = vector.broadcast %c0_i32_4 : i32 to vector<64x1xi32>
    %6 = arith.cmpi eq, %4, %5 : vector<64x1xi32>
    %7 = arith.extui %6 : vector<64x1xi1> to vector<64x1xi32>
    %8 = arith.sitofp %7 : vector<64x1xi32> to vector<64x1xf32>
    %9 = vector.broadcast %8 : vector<64x1xf32> to vector<64x32xf32>
    %10 = arith.mulf %3, %9 : vector<64x32xf32>
    %c0_5 = arith.constant 0 : index
    %c0_6 = arith.constant 0 : index
    %c0_7 = arith.constant 0 : index
    %11 = vector.load %arg5[%c0_5, %c0_6, %c0_7] : memref<4x32x32xf32, #tpu.memory_space<vmem>>, vector<1x32x32xf32>
    %12 = vector.shape_cast %11 : vector<1x32x32xf32> to vector<32x32xf32>
    %cst = arith.constant dense<0.000000e+00> : vector<32x32xf32>
    %13 = tpu.matmul %10, %3, %cst {dimension_numbers = #tpu.dot_dimension_numbers<[0], [0], [1], [1], [0, 1, 1, 1], [], []>} : vector<64x32xf32>, vector<64x32xf32>, vector<32x32xf32> -> vector<32x32xf32>
    %14 = arith.addf %12, %13 : vector<32x32xf32>
    %c0_8 = arith.constant 0 : index
    %c0_9 = arith.constant 0 : index
    %c0_10 = arith.constant 0 : index
    %15 = vector.load %arg5[%c0_8, %c0_9, %c0_10] : memref<4x32x32xf32, #tpu.memory_space<vmem>>, vector<1x32x32xf32>
    %16 = vector.shape_cast %15 : vector<1x32x32xf32> to vector<32x32xf32>
    %17 = vector.shape_cast %14 : vector<32x32xf32> to vector<1x32x32xf32>
    tpu.vector_store %arg5[%c0_8, %c0_9, %c0_10], %17 {strides = array<i32>} : memref<4x32x32xf32, #tpu.memory_space<vmem>>, vector<1x32x32xf32>,
    %c1_i32 = arith.constant 1 : i32
    %18 = vector.broadcast %c1_i32 : i32 to vector<64x1xi32>
    %19 = arith.cmpi eq, %4, %18 : vector<64x1xi32>
    %20 = arith.extui %19 : vector<64x1xi1> to vector<64x1xi32>
    %21 = arith.sitofp %20 : vector<64x1xi32> to vector<64x1xf32>
    %22 = vector.broadcast %21 : vector<64x1xf32> to vector<64x32xf32>
    %23 = arith.mulf %3, %22 : vector<64x32xf32>
    %c1 = arith.constant 1 : index
    %c0_11 = arith.constant 0 : index
    %c0_12 = arith.constant 0 : index
    %24 = vector.load %arg5[%c1, %c0_11, %c0_12] : memref<4x32x32xf32, #tpu.memory_space<vmem>>, vector<1x32x32xf32>
    %25 = vector.shape_cast %24 : vector<1x32x32xf32> to vector<32x32xf32>
    %cst_13 = arith.constant dense<0.000000e+00> : vector<32x32xf32>
    %26 = tpu.matmul %23, %3, %cst_13 {dimension_numbers = #tpu.dot_dimension_numbers<[0], [0], [1], [1], [0, 1, 1, 1], [], []>} : vector<64x32xf32>, vector<64x32xf32>, vector<32x32xf32> -> vector<32x32xf32>
    %27 = arith.addf %25, %26 : vector<32x32xf32>
    %c1_14 = arith.constant 1 : index
    %c0_15 = arith.constant 0 : index
    %c0_16 = arith.constant 0 : index
    %28 = vector.load %arg5[%c1_14, %c0_15, %c0_16] : memref<4x32x32xf32, #tpu.memory_space<vmem>>, vector<1x32x32xf32>
    %29 = vector.shape_cast %28 : vector<1x32x32xf32> to vector<32x32xf32>
    %30 = vector.shape_cast %27 : vector<32x32xf32> to vector<1x32x32xf32>
    tpu.vector_store %arg5[%c1_14, %c0_15, %c0_16], %30 {strides = array<i32>} : memref<4x32x32xf32, #tpu.memory_space<vmem>>, vector<1x32x32xf32>,
    %c2_i32 = arith.constant 2 : i32
    %31 = vector.broadcast %c2_i32 : i32 to vector<64x1xi32>
    %32 = arith.cmpi eq, %4, %31 : vector<64x1xi32>
    %33 = arith.extui %32 : vector<64x1xi1> to vector<64x1xi32>
    %34 = arith.sitofp %33 : vector<64x1xi32> to vector<64x1xf32>
    %35 = vector.broadcast %34 : vector<64x1xf32> to vector<64x32xf32>
    %36 = arith.mulf %3, %35 : vector<64x32xf32>
    %c2 = arith.constant 2 : index
    %c0_17 = arith.constant 0 : index
    %c0_18 = arith.constant 0 : index
    %37 = vector.load %arg5[%c2, %c0_17, %c0_18] : memref<4x32x32xf32, #tpu.memory_space<vmem>>, vector<1x32x32xf32>
    %38 = vector.shape_cast %37 : vector<1x32x32xf32> to vector<32x32xf32>
    %cst_19 = arith.constant dense<0.000000e+00> : vector<32x32xf32>
    %39 = tpu.matmul %36, %3, %cst_19 {dimension_numbers = #tpu.dot_dimension_numbers<[0], [0], [1], [1], [0, 1, 1, 1], [], []>} : vector<64x32xf32>, vector<64x32xf32>, vector<32x32xf32> -> vector<32x32xf32>
    %40 = arith.addf %38, %39 : vector<32x32xf32>
    %c2_20 = arith.constant 2 : index
    %c0_21 = arith.constant 0 : index
    %c0_22 = arith.constant 0 : index
    %41 = vector.load %arg5[%c2_20, %c0_21, %c0_22] : memref<4x32x32xf32, #tpu.memory_space<vmem>>, vector<1x32x32xf32>
    %42 = vector.shape_cast %41 : vector<1x32x32xf32> to vector<32x32xf32>
    %43 = vector.shape_cast %40 : vector<32x32xf32> to vector<1x32x32xf32>
    tpu.vector_store %arg5[%c2_20, %c0_21, %c0_22], %43 {strides = array<i32>} : memref<4x32x32xf32, #tpu.memory_space<vmem>>, vector<1x32x32xf32>,
    %c3_i32 = arith.constant 3 : i32
    %44 = vector.broadcast %c3_i32 : i32 to vector<64x1xi32>
    %45 = arith.cmpi eq, %4, %44 : vector<64x1xi32>
    %46 = arith.extui %45 : vector<64x1xi1> to vector<64x1xi32>
    %47 = arith.sitofp %46 : vector<64x1xi32> to vector<64x1xf32>
    %48 = vector.broadcast %47 : vector<64x1xf32> to vector<64x32xf32>
    %49 = arith.mulf %3, %48 : vector<64x32xf32>
    %c3 = arith.constant 3 : index
    %c0_23 = arith.constant 0 : index
    %c0_24 = arith.constant 0 : index
    %50 = vector.load %arg5[%c3, %c0_23, %c0_24] : memref<4x32x32xf32, #tpu.memory_space<vmem>>, vector<1x32x32xf32>
    %51 = vector.shape_cast %50 : vector<1x32x32xf32> to vector<32x32xf32>
    %cst_25 = arith.constant dense<0.000000e+00> : vector<32x32xf32>
    %52 = tpu.matmul %49, %3, %cst_25 {dimension_numbers = #tpu.dot_dimension_numbers<[0], [0], [1], [1], [0, 1, 1, 1], [], []>} : vector<64x32xf32>, vector<64x32xf32>, vector<32x32xf32> -> vector<32x32xf32>
    %53 = arith.addf %51, %52 : vector<32x32xf32>
    %c3_26 = arith.constant 3 : index
    %c0_27 = arith.constant 0 : index
    %c0_28 = arith.constant 0 : index
    %54 = vector.load %arg5[%c3_26, %c0_27, %c0_28] : memref<4x32x32xf32, #tpu.memory_space<vmem>>, vector<1x32x32xf32>
    %55 = vector.shape_cast %54 : vector<1x32x32xf32> to vector<32x32xf32>
    %56 = vector.shape_cast %53 : vector<32x32xf32> to vector<1x32x32xf32>
    tpu.vector_store %arg5[%c3_26, %c0_27, %c0_28], %56 {strides = array<i32>} : memref<4x32x32xf32, #tpu.memory_space<vmem>>, vector<1x32x32xf32>,
    %c1_i32_29 = arith.constant 1 : i32
    %57 = arith.cmpi eq, %arg1, %c1_i32_29 : i32
    %58 = arith.extui %57 : i1 to i32
    %c0_i32_30 = arith.constant 0 : i32
    %59 = arith.cmpi ne, %58, %c0_i32_30 : i32
    scf.if %59 {
      %c0_31 = arith.constant 0 : index
      %c0_32 = arith.constant 0 : index
      %c0_33 = arith.constant 0 : index
      %60 = vector.load %arg5[%c0_31, %c0_32, %c0_33] : memref<4x32x32xf32, #tpu.memory_space<vmem>>, vector<4x32x32xf32>
      %61 = vector.shape_cast %60 : vector<4x32x32xf32> to vector<1x4x32x32xf32>
      %c0_34 = arith.constant 0 : index
      %c0_35 = arith.constant 0 : index
      %c0_36 = arith.constant 0 : index
      %c0_37 = arith.constant 0 : index
      %62 = vector.load %arg4[%c0_34, %c0_35, %c0_36, %c0_37] : memref<1x4x32x32xf32, #tpu.memory_space<vmem>>, vector<1x4x32x32xf32>
      tpu.vector_store %arg4[%c0_34, %c0_35, %c0_36, %c0_37], %61 {strides = array<i32>} : memref<1x4x32x32xf32, #tpu.memory_space<vmem>>, vector<1x4x32x32xf32>,
    } else {
    }
    return
  }
  func.func @transform_0(%arg0: i32, %arg1: i32) -> (i32, i32) {
    %c2_i32 = arith.constant 2 : i32
    %0 = arith.muli %arg0, %c2_i32 : i32
    %1 = arith.addi %0, %arg1 : i32
    %c0_i32 = arith.constant 0 : i32
    %c0_i32_0 = arith.constant 0 : i32
    return %1, %c0_i32 : i32, i32
  }
  func.func @transform_1(%arg0: i32, %arg1: i32) -> (i32, i32) {
    %c2_i32 = arith.constant 2 : i32
    %0 = arith.muli %arg0, %c2_i32 : i32
    %1 = arith.addi %0, %arg1 : i32
    %c0_i32 = arith.constant 0 : i32
    %c0_i32_0 = arith.constant 0 : i32
    return %1, %c0_i32 : i32, i32
  }
  func.func @transform_2(%arg0: i32, %arg1: i32) -> (i32, i32, i32, i32) {
    %c0_i32 = arith.constant 0 : i32
    %c0_i32_0 = arith.constant 0 : i32
    %c0_i32_1 = arith.constant 0 : i32
    %c0_i32_2 = arith.constant 0 : i32
    return %arg0, %c0_i32, %c0_i32_0, %c0_i32_1 : i32, i32, i32, i32
  }
}

</mosaic_0001>

<llo_original>
// kernel: custom-call.5
$region0: #{custom-call.5}
  %s0 = inlined_call_operand.vmem [shape: f32[4,32,32], index: 0, kind: input, shape index: {}]
  %s1 = inlined_call_operand.vmem [shape: f32[4,32,32], index: 1, kind: output, shape index: {0}]
  %s2 = inlined_call_operand.hbm [shape: s32[4,32], index: 2, kind: output, shape index: {1}]
  %s3 = inlined_call_operand.hbm [shape: s32[4,32], index: 3, kind: output, shape index: {2}]
  %4 = xla_tuple %s1, %s2, %s3
  $region1: #{custom-call.5} parent=0
    #allocation0 [shape = 'u8[32768]{0}', space=vmem, size = 0x8000, scoped, tag = 'operand span for operand 0']
    #allocation1 [shape = 'u8[32768]{0}', space=vmem, size = 0x8000, scoped, tag = 'operand span for operand 1']
    #allocation2 [shape = 'u8[4096]{0}', space=vmem, size = 0x1000, scoped, tag = 'operand span for operand 2']
    #allocation3 [shape = 'u8[4096]{0}', space=vmem, size = 0x1000, scoped, tag = 'packed  for operand 2']
    #allocation4 [shape = 's32[2]{0}', space=sflag, size = 0x8, scoped, tag = 'scoped memory for custom-call.5']
    #allocation5 [shape = 'u8[4096]{0}', space=vmem, size = 0x1000, scoped, tag = 'operand span for operand 3']
    #allocation6 [shape = 'u8[4096]{0}', space=vmem, size = 0x1000, scoped, tag = 'packed  for operand 3']
    #allocation7 [shape = 's32[2]{0}', space=sflag, size = 0x8, scoped, tag = 'scoped memory for custom-call.5']
    %5 = vsyncpa [#allocation4], 0
    %s6 = scalar_lea.sflag [#allocation4], 1
    %7 = vsyncpa %s6, 0
    %8 = vsyncpa [#allocation7], 0
    %s9 = scalar_lea.sflag [#allocation7], 1
    %10 = vsyncpa %s9, 0
    loop: start=0, step=1, limit=6
    $region2: #{custom-call.5} parent=1 // loop_pre_header
      _
    $region3: #{custom-call.5} parent=1 // loop_header
      %s12 = sphi 0, %s16
      %p13 = scmp.ge.s32.totalorder %s12, 6
      %s24 = sphi 0, %s26
      %s27 = sphi 0, %s24
      %s28 = sphi 0, %s27
      %s44 = sphi 0, %s28
      %s52 = sphi 0, %s54
      %s55 = sphi 0, %s52
      %s56 = sphi 0, %s55
      %s72 = sphi 0, %s56
    $region4: #{custom-call.5} parent=1 // loop_header_branch
      %15 = sbr.rel (%p13) target = $region8
    $region5: #{custom-call.5} parent=1 // loop_body
      %s17 = ssub.s32 %s12, 1
      %s18 = ssub.s32 %s12, 2
      %s19 = sadd.s32 %s12, 1
      %s20 = sshrl.u32 %s12, 3
      %s21 = sshrl.u32 %s19, 3
      %s22 = ssub.s32 %s20, %s21
      %p23 = scmp.eq.s32.totalorder %s22, 0
      %s25 = sadd.s32 %s24, 1
      %s26 = scalar_select %p23, %s24, %s25
      %p29 = pneg %p23
      %p30 = scmp.eq.s32.totalorder %s12, 3
      %p31 = por %p29, %p30
      %p32 = scmp.ne.s32.totalorder %s24, %s27
      %p33 = scmp.eq.s32.totalorder %s12, 0
      %p34 = por %p32, %p33
      %p35 = scmp.ne.s32.totalorder %s24, %s27
      %p36 = scmp.eq.s32.totalorder %s17, 3
      %p37 = por %p35, %p36
      %p38 = scmp.ne.s32.totalorder %s27, %s28
      %p39 = scmp.eq.s32.totalorder %s17, 0
      %p40 = por %p38, %p39
      %p41 = scmp.ne.s32.totalorder %s27, %s28
      %p42 = scmp.eq.s32.totalorder %s18, 3
      %p43 = por %p41, %p42
      %p45 = scmp.ne.s32.totalorder %s28, %s44
      %p46 = scmp.eq.s32.totalorder %s18, 0
      %p47 = por %p45, %p46
      %s48 = sshrl.u32 %s12, 3
      %s49 = sshrl.u32 %s19, 3
      %s50 = ssub.s32 %s48, %s49
      %p51 = scmp.eq.s32.totalorder %s50, 0
      %s53 = sadd.s32 %s52, 1
      %s54 = scalar_select %p51, %s52, %s53
      %p57 = pneg %p51
      %p58 = scmp.eq.s32.totalorder %s12, 3
      %p59 = por %p57, %p58
      %p60 = scmp.ne.s32.totalorder %s52, %s55
      %p61 = scmp.eq.s32.totalorder %s12, 0
      %p62 = por %p60, %p61
      %p63 = scmp.ne.s32.totalorder %s52, %s55
      %p64 = scmp.eq.s32.totalorder %s17, 3
      %p65 = por %p63, %p64
      %p66 = scmp.ne.s32.totalorder %s55, %s56
      %p67 = scmp.eq.s32.totalorder %s17, 0
      %p68 = por %p66, %p67
      %p69 = scmp.ne.s32.totalorder %s55, %s56
      %p70 = scmp.eq.s32.totalorder %s18, 3
      %p71 = por %p69, %p70
      %p73 = scmp.ne.s32.totalorder %s56, %s72
      %p74 = scmp.eq.s32.totalorder %s18, 0
      %p75 = por %p73, %p74
      %p76 = scmp.le.s32.totalorder 1, %s12
      %p77 = scmp.lt.s32.totalorder %s12, 5
      %p78 = pnand %p76, %p77
      %p79 = pneg %p78
      // Predicated region
      $region9: #{custom-call.5} parent=5 // pred_check
        _
      $region10: #{custom-call.5} parent=5 // pred_check_branch
        %81 = sbr.rel (%p78) target = $region12
      $region11: #{custom-call.5} parent=5 // pred_region
        %s82 = ssub.s32 %s12, 1
      $region12: #{custom-call.5} parent=5 // pred_fallthru
        _
      %p83 = scmp.lt.s32.totalorder %s12, 4
      // Predicated region
      $region13: #{custom-call.5} parent=5 // pred_check
        %p84 = pneg %p83
      $region14: #{custom-call.5} parent=5 // pred_check_branch
        %86 = sbr.rel (%p84) target = $region16
      $region15: #{custom-call.5} parent=5 // pred_region
        %s87 = sand.u32 %s12, 1
        %s88 = sand.u32 %s12, 1
        %s89 = smul.addr %s88, 32
        %s90 = scalar_lea.vmem [#allocation0], %s89
        %s91 = smul.addr %s12, 32
        %s92 = scalar_lea.vmem %s0, %s91
        // Predicated region
        $region17: #{custom-call.5} parent=15 // pred_check
          _
        $region18: #{custom-call.5} parent=15 // pred_check_branch
          %94 = sbr.rel (0) target = $region20
        $region19: #{custom-call.5} parent=15 // pred_region
          // Predicated region
          $region21: #{custom-call.5} parent=19 // pred_check
            _
          $region22: #{custom-call.5} parent=19 // pred_check_branch
            %96 = sbr.rel (0) target = $region24
          $region23: #{custom-call.5} parent=19 // pred_region
            loop: start=0, step=1, limit=1
            $region25: #{custom-call.5} parent=23 // loop_pre_header
              _
            $region26: #{custom-call.5} parent=23 // loop_header
              %s98 = sphi 0, %s102
              %p99 = scmp.ge.s32.totalorder %s98, 1
              %s103 = sphi %s92, %s92
              %s104 = sphi %s90, %s90
            $region27: #{custom-call.5} parent=23 // loop_header_branch
              %101 = sbr.rel (%p99) target = $region31
            $region28: #{custom-call.5} parent=23 // loop_body
              %v105 = vld [vmem:[%s103] sm:$0xff]
              %106 = vst [vmem:[%s104] sm:$0xff] %v105
              %v107 = vld [vmem:[%s103 + $0x8] sm:$0xff]
              %108 = vst [vmem:[%s104 + $0x8] sm:$0xff] %v107
              %v109 = vld [vmem:[%s103 + $0x10] sm:$0xff]
              %110 = vst [vmem:[%s104 + $0x10] sm:$0xff] %v109
              %v111 = vld [vmem:[%s103 + $0x18] sm:$0xff]
              %112 = vst [vmem:[%s104 + $0x18] sm:$0xff] %v111
            $region29: #{custom-call.5} parent=23 // loop_footer
              %s102 = sadd.s32 1, %s98
            $region30: #{custom-call.5} parent=23 // loop_footer_branch
              %97 = sbr.rel target = $region26
            $region31: #{custom-call.5} parent=23 // loop_exit
              _
          $region24: #{custom-call.5} parent=19 // pred_fallthru
            _
          // Predicated region
          $region32: #{custom-call.5} parent=19 // pred_check
            _
          $region33: #{custom-call.5} parent=19 // pred_check_branch
            %114 = sbr.rel target = $region35
          $region34: #{custom-call.5} parent=19 // pred_region
            _
          $region35: #{custom-call.5} parent=19 // pred_fallthru
            _
        $region20: #{custom-call.5} parent=15 // pred_fallthru
          _
        %115 = vnop
      $region16: #{custom-call.5} parent=5 // pred_fallthru
        _
      %p116 = scmp.le.s32.totalorder 1, %s12
      %p117 = scmp.lt.s32.totalorder %s12, 5
      %p118 = pnand %p116, %p117
      %p119 = pneg %p118
      // Predicated region
      $region36: #{custom-call.5} parent=5 // pred_check
        _
      $region37: #{custom-call.5} parent=5 // pred_check_branch
        %121 = sbr.rel (%p118) target = $region39
      $region38: #{custom-call.5} parent=5 // pred_region
        #allocation8 [shape = 's32[32,128]{1,0}', space=vmem, size = 0x4000, scoped, tag = 'scratch for permutations']
        %s122 = ssub.s32 %s12, 1
        %s123 = sand.u32 %s17, 1
        %s124 = sand.u32 %s17, 1
        %s125 = smul.addr %s124, 32
        %s126 = scalar_lea.vmem [#allocation0], %s125
        %s127 = sand.u32 %s17, 1
        %s128 = sand.u32 %s17, 1
        %s129 = smul.addr %s128, 32
        %s130 = scalar_lea.vmem [#allocation0], %s129
        %s131 = sand.u32 %s17, 1
        %s132 = sand.u32 %s17, 1
        %s133 = smul.addr %s132, 32
        %s134 = scalar_lea.vmem [#allocation1], %s133
        %p135 = pneg %p40
        %p136 = pneg %p37
        %s137 = sand.u32 %s27, 1
        %s138 = scalar_lea.sflag [#allocation4], %s137
        %s139 = sand.u32 %s27, 1
        %s140 = smul.addr %s139, 4
        %s141 = scalar_lea.vmem [#allocation3], %s140
        %p142 = pneg %p68
        %p143 = pneg %p65
        %s144 = sand.u32 %s55, 1
        %s145 = scalar_lea.sflag [#allocation7], %s144
        %s146 = sand.u32 %s55, 1
        %s147 = smul.addr %s146, 4
        %s148 = scalar_lea.vmem [#allocation6], %s147
        %s149 = sshrl.u32 %s17, 3
        %s150 = sshrl.u32 %s17, 3
        %v151 = vld [vmem:[%s126] sm:$0xff]
        %152 = vst [vmem:[%s134] sm:$0xff] %v151
        %s153 = scalar_lea.vmem %s134, 8 [#allocation1]
        %s154 = scalar_lea.vmem %s126, 8 [#allocation0]
        %v155 = vld [vmem:[%s154] sm:$0xff]
        %156 = vst [vmem:[%s153] sm:$0xff] %v155
        %s157 = scalar_lea.vmem %s134, 16 [#allocation1]
        %s158 = scalar_lea.vmem %s126, 16 [#allocation0]
        %v159 = vld [vmem:[%s158] sm:$0xff]
        %160 = vst [vmem:[%s157] sm:$0xff] %v159
        %s161 = scalar_lea.vmem %s134, 24 [#allocation1]
        %s162 = scalar_lea.vmem %s126, 24 [#allocation0]
        %v163 = vld [vmem:[%s162] sm:$0xff]
        %164 = vst [vmem:[%s161] sm:$0xff] %v163
        %s165 = sand.u32 %s17, 7
        %s166 = scalar_lea.vmem [#allocation2], %s165
        %s167 = sand.u32 %s17, 7
        %s168 = scalar_lea.vmem [#allocation5], %s167
        %169 = vst [vmem:[%s166] sm:$0x1] 0
        %v170 = vlaneseq
        %v171 = vshrl.u32 %v170, 7
        %v172 = vmov %v171
        loop: start=0, step=1, limit=4
        $region40: #{custom-call.5} parent=38 // loop_pre_header
          _
        $region41: #{custom-call.5} parent=38 // loop_header
          %s174 = sphi 0, %s178
          %p175 = scmp.ge.s32.totalorder %s174, 4
        $region42: #{custom-call.5} parent=38 // loop_header_branch
          %177 = sbr.rel (%p175) target = $region46
        $region43: #{custom-call.5} parent=38 // loop_body
          %s179 = smul.addr %s174, 8
          %s180 = scalar_lea.vmem [#allocation8], %s179
          %s181 = smul.u32 %s174, 8
          %v182 = vstv %s181
          %v183 = vadd.s32 %v172, %v182
          %184 = vst [vmem:[%s180] sm:$0xff] %v183
        $region44: #{custom-call.5} parent=38 // loop_footer
          %s178 = sadd.s32 1, %s174
        $region45: #{custom-call.5} parent=38 // loop_footer_branch
          %173 = sbr.rel target = $region41
        $region46: #{custom-call.5} parent=38 // loop_exit
          _
        loop: start=0, step=1, limit=32
        $region47: #{custom-call.5} parent=38 // loop_pre_header
          _
        $region48: #{custom-call.5} parent=38 // loop_header
          %s186 = sphi 0, %s190
          %p187 = scmp.ge.s32.totalorder %s186, 32
        $region49: #{custom-call.5} parent=38 // loop_header_branch
          %189 = sbr.rel (%p187) target = $region53
        $region50: #{custom-call.5} parent=38 // loop_body
          %v191 = vstv %s186
          %v192 = vlaneseq
          %v193 = vshrl.u32 %v192, 7
          %v194 = vmov %v193
          %v195 = vld [vmem:[%s134] sm:$0xff]
          %v196 = vand.u32 2147483647, %v195
          %v198 = vstv %s186
          %vm199 = vcmp.ge.s32.totalorder %v194, %v198
          %vm200 = vcmp.lt.s32.totalorder %v194, 32
          %vm201 = vmand %vm199, %vm200
          %vm202 = vcmp.lt.f32.partialorder -inf, %v196
          %vm203 = vmand %vm201, %vm202
          %v204 = vsel %vm203, %v194, %v191
          %v205 = vsel %vm203, %v196, -inf
          %s206 = scalar_lea.vmem %s134, 8 [#allocation1]
          %v207 = vld [vmem:[%s206] sm:$0xff]
          %v208 = vand.u32 2147483647, %v207
          %v209 = vadd.s32 %v194, 8
          %v210 = vstv %s186
          %vm211 = vcmp.ge.s32.totalorder %v209, %v210
          %vm212 = vcmp.lt.s32.totalorder %v209, 32
          %vm213 = vmand %vm211, %vm212
          %vm214 = vcmp.lt.f32.partialorder %v205, %v208
          %vm215 = vmand %vm213, %vm214
          %v216 = vsel %vm215, %v209, %v204
          %v217 = vsel %vm215, %v208, %v205
          %s218 = scalar_lea.vmem %s134, 16 [#allocation1]
          %v219 = vld [vmem:[%s218] sm:$0xff]
          %v220 = vand.u32 2147483647, %v219
          %v221 = vadd.s32 %v194, 16
          %v222 = vstv %s186
          %vm223 = vcmp.ge.s32.totalorder %v221, %v222
          %vm224 = vcmp.lt.s32.totalorder %v221, 32
          %vm225 = vmand %vm223, %vm224
          %vm226 = vcmp.lt.f32.partialorder %v217, %v220
          %vm227 = vmand %vm225, %vm226
          %v228 = vsel %vm227, %v221, %v216
          %v229 = vsel %vm227, %v220, %v217
          %s230 = scalar_lea.vmem %s134, 24 [#allocation1]
          %v231 = vld [vmem:[%s230] sm:$0xff]
          %v232 = vand.u32 2147483647, %v231
          %v233 = vadd.s32 %v194, 24
          %v234 = vstv %s186
          %vm235 = vcmp.ge.s32.totalorder %v233, %v234
          %vm236 = vcmp.lt.s32.totalorder %v233, 32
          %vm237 = vmand %vm235, %vm236
          %vm238 = vcmp.lt.f32.partialorder %v229, %v232
          %vm239 = vmand %vm237, %vm238
          %v240 = vsel %vm239, %v233, %v228
          %v241 = vsel %vm239, %v232, %v229
          %v242 = vrot.slane %v241, 1
          %v243 = vrot.slane %v240, 1
          %vm244 = vcmp.ge.f32.partialorder %v242, %v241
          %v245 = vsel %vm244, %v242, %v241
          %v246 = vsel %vm244, %v243, %v240
          %v247 = vrot.slane %v242, 1
          %v248 = vrot.slane %v243, 1
          %vm249 = vcmp.ge.f32.partialorder %v247, %v245
          %v250 = vsel %vm249, %v247, %v245
          %v251 = vsel %vm249, %v248, %v246
          %v252 = vrot.slane %v247, 1
          %v253 = vrot.slane %v248, 1
          %vm254 = vcmp.ge.f32.partialorder %v252, %v250
          %v255 = vsel %vm254, %v252, %v250
          %v256 = vsel %vm254, %v253, %v251
          %v257 = vrot.slane %v252, 1
          %v258 = vrot.slane %v253, 1
          %vm259 = vcmp.ge.f32.partialorder %v257, %v255
          %v260 = vsel %vm259, %v257, %v255
          %v261 = vsel %vm259, %v258, %v256
          %v262 = vrot.slane %v257, 1
          %v263 = vrot.slane %v258, 1
          %vm264 = vcmp.ge.f32.partialorder %v262, %v260
          %v265 = vsel %vm264, %v262, %v260
          %v266 = vsel %vm264, %v263, %v261
          %v267 = vrot.slane %v262, 1
          %v268 = vrot.slane %v263, 1
          %vm269 = vcmp.ge.f32.partialorder %v267, %v265
          %v270 = vsel %vm269, %v267, %v265
          %v271 = vsel %vm269, %v268, %v266
          %v272 = vrot.slane %v267, 1
          %v273 = vrot.slane %v268, 1
          %vm274 = vcmp.ge.f32.partialorder %v272, %v270
          %v275 = vsel %vm274, %v272, %v270
          %v276 = vsel %vm274, %v273, %v271
          %s277 = ssub.s32 128, %s186
          %278 = vrot.lane.b32.xlu0 %v276, %s277
          %v279 = vpop.permute.xlu0 %278
          %s280 = vtos %v279
          %v281 = vstv %s186
          %v282 = vlaneseq
          %v283 = vand.u32 %v282, 127
          %vm284 = vcmp.eq.s32.totalorder %v283, %v281
          %v285 = vstv %s280
          %v286 = vld [vmem:[%s166] ss:$0 sm:$0xff]
          %v287 = vsel %vm284, %v285, %v286
          %288 = vst [vmem:[%s166] sm:$0x1] %v287
          %s289 = scalar_lea.vmem %s134, %s186 [#allocation1]
          %s290 = scalar_lea.vmem %s134, %s280 [#allocation1]
          %v291 = vld [vmem:[%s289] ss:$0 sm:$0xff]
          %v292 = vld [vmem:[%s290] ss:$0 sm:$0xff]
          %293 = vst [vmem:[%s290] sm:$0x1] %v291
          %294 = vst [vmem:[%s289] sm:$0x1] %v292
          %s295 = scalar_lea.vmem [#allocation8], %s186
          %s296 = scalar_lea.vmem [#allocation8], %s280
          %v297 = vld [vmem:[%s295] ss:$0 sm:$0xff]
          %v298 = vld [vmem:[%s296] ss:$0 sm:$0xff]
          %299 = vst [vmem:[%s296] sm:$0x1] %v297
          %300 = vst [vmem:[%s295] sm:$0x1] %v298
          %vm301 = vcmp.ne.f32.partialorder %v292, 0.0
          %vm302 = vmand %vm284, %vm301
          %v303 = vsel %vm302, %v292, 1.0
          %v304 = vlaneseq
          %v305 = vand.u32 %v304, 127
          %v306 = vstv %s186
          %vm307 = vcmp.gt.s32.totalorder %v305, %v306
          %v308 = vsel %vm307, %v292, 0.0
          %v309 = vlaneseq
          %v310 = vshrl.u32 %v309, 7
          %v311 = vmov %v310
          %v312 = vld [vmem:[%s134] sm:$0xff]
          %v314 = vstv %s186
          %vm315 = vcmp.gt.s32.totalorder %v311, %v314
          %v316 = vsel %vm315, %v303, 1.0
          %v317 = vrcp.pop %v316
          %v318 = vmul.f32 %v316, %v317
          %v319 = vsub.f32 1.0, %v318
          %v320 = vmul.f32 %v317, %v319
          %v321 = vadd.f32 %v317, %v320
          %vm322 = vweird.f32 %v316
          %vm323 = vweird.f32 %v317
          %vm324 = vmor %vm322, %vm323
          %v325 = vsel %vm324, %v317, %v321
          %v326 = vand.u32 2147483647, %v316
          %vm327 = vcmp.eq.f32.partialorder %v326, 8.507059e+37
          %v328 = vand.u32 %v316, 2147483648
          %v329 = vor.u32 1.1754944e-38, %v328
          %v330 = vsel %vm327, %v329, %v325
          %v331 = vmul.f32 %v312, %v330
          %vm332 = vmand %vm315, %vm284
          %v333 = vsel %vm332, %v331, 0.0
          %334 = vadd.xlane.f32.xlu0 %v333
          %v335 = vpop.xlane.xlu0 %334
          %v336 = vmul.f32 %v335, %v308
          %v337 = vsub.f32 %v331, %v336
          %338 = vst [vmem:[%s134] sm:$0xff] %v337
          %s339 = scalar_lea.vmem %s134, 8 [#allocation1]
          %v340 = vld [vmem:[%s339] sm:$0xff]
          %v341 = vadd.s32 %v311, 8
          %v342 = vstv %s186
          %vm343 = vcmp.gt.s32.totalorder %v341, %v342
          %v344 = vsel %vm343, %v303, 1.0
          %v345 = vrcp.pop %v344
          %v346 = vmul.f32 %v344, %v345
          %v347 = vsub.f32 1.0, %v346
          %v348 = vmul.f32 %v345, %v347
          %v349 = vadd.f32 %v345, %v348
          %vm350 = vweird.f32 %v344
          %vm351 = vweird.f32 %v345
          %vm352 = vmor %vm350, %vm351
          %v353 = vsel %vm352, %v345, %v349
          %v354 = vand.u32 2147483647, %v344
          %vm355 = vcmp.eq.f32.partialorder %v354, 8.507059e+37
          %v356 = vand.u32 %v344, 2147483648
          %v357 = vor.u32 1.1754944e-38, %v356
          %v358 = vsel %vm355, %v357, %v353
          %v359 = vmul.f32 %v340, %v358
          %vm360 = vmand %vm343, %vm284
          %v361 = vsel %vm360, %v359, 0.0
          %362 = vadd.xlane.f32.xlu0 %v361
          %v363 = vpop.xlane.xlu0 %362
          %v364 = vmul.f32 %v363, %v308
          %v365 = vsub.f32 %v359, %v364
          %366 = vst [vmem:[%s339] sm:$0xff] %v365
          %s367 = scalar_lea.vmem %s134, 16 [#allocation1]
          %v368 = vld [vmem:[%s367] sm:$0xff]
          %v369 = vadd.s32 %v311, 16
          %v370 = vstv %s186
          %vm371 = vcmp.gt.s32.totalorder %v369, %v370
          %v372 = vsel %vm371, %v303, 1.0
          %v373 = vrcp.pop %v372
          %v374 = vmul.f32 %v372, %v373
          %v375 = vsub.f32 1.0, %v374
          %v376 = vmul.f32 %v373, %v375
          %v377 = vadd.f32 %v373, %v376
          %vm378 = vweird.f32 %v372
          %vm379 = vweird.f32 %v373
          %vm380 = vmor %vm378, %vm379
          %v381 = vsel %vm380, %v373, %v377
          %v382 = vand.u32 2147483647, %v372
          %vm383 = vcmp.eq.f32.partialorder %v382, 8.507059e+37
          %v384 = vand.u32 %v372, 2147483648
          %v385 = vor.u32 1.1754944e-38, %v384
          %v386 = vsel %vm383, %v385, %v381
          %v387 = vmul.f32 %v368, %v386
          %vm388 = vmand %vm371, %vm284
          %v389 = vsel %vm388, %v387, 0.0
          %390 = vadd.xlane.f32.xlu0 %v389
          %v391 = vpop.xlane.xlu0 %390
          %v392 = vmul.f32 %v391, %v308
          %v393 = vsub.f32 %v387, %v392
          %394 = vst [vmem:[%s367] sm:$0xff] %v393
          %s395 = scalar_lea.vmem %s134, 24 [#allocation1]
          %v396 = vld [vmem:[%s395] sm:$0xff]
          %v397 = vadd.s32 %v311, 24
          %v398 = vstv %s186
          %vm399 = vcmp.gt.s32.totalorder %v397, %v398
          %v400 = vsel %vm399, %v303, 1.0
          %v401 = vrcp.pop %v400
          %v402 = vmul.f32 %v400, %v401
          %v403 = vsub.f32 1.0, %v402
          %v404 = vmul.f32 %v401, %v403
          %v405 = vadd.f32 %v401, %v404
          %vm406 = vweird.f32 %v400
          %vm407 = vweird.f32 %v401
          %vm408 = vmor %vm406, %vm407
          %v409 = vsel %vm408, %v401, %v405
          %v410 = vand.u32 2147483647, %v400
          %vm411 = vcmp.eq.f32.partialorder %v410, 8.507059e+37
          %v412 = vand.u32 %v400, 2147483648
          %v413 = vor.u32 1.1754944e-38, %v412
          %v414 = vsel %vm411, %v413, %v409
          %v415 = vmul.f32 %v396, %v414
          %vm416 = vmand %vm399, %vm284
          %v417 = vsel %vm416, %v415, 0.0
          %418 = vadd.xlane.f32.xlu0 %v417
          %v419 = vpop.xlane.xlu0 %418
          %v420 = vmul.f32 %v419, %v308
          %v421 = vsub.f32 %v415, %v420
          %422 = vst [vmem:[%s395] sm:$0xff] %v421
        $region51: #{custom-call.5} parent=38 // loop_footer
          %s190 = sadd.s32 1, %s186
        $region52: #{custom-call.5} parent=38 // loop_footer_branch
          %185 = sbr.rel target = $region48
        $region53: #{custom-call.5} parent=38 // loop_exit
          _
        %v423 = vld [vmem:[#allocation8] sm:$0xff]
        %s424 = scalar_lea.vmem [#allocation8], 8
        %v425 = vld [vmem:[%s424] sm:$0xff]
        %s426 = scalar_lea.vmem [#allocation8], 16
        %v427 = vld [vmem:[%s426] sm:$0xff]
        %s428 = scalar_lea.vmem [#allocation8], 24
        %v429 = vld [vmem:[%s428] sm:$0xff]
        %s430 = scalar_lea.vmem [#allocation8], 32
        %s431 = scalar_lea.vmem [#allocation8], 40
        %s432 = scalar_lea.vmem [#allocation8], 48
        %s433 = scalar_lea.vmem [#allocation8], 56
        %s434 = scalar_lea.vmem [#allocation8], 64
        %s435 = scalar_lea.vmem [#allocation8], 72
        %s436 = scalar_lea.vmem [#allocation8], 80
        %s437 = scalar_lea.vmem [#allocation8], 88
        %s438 = scalar_lea.vmem [#allocation8], 96
        %s439 = scalar_lea.vmem [#allocation8], 104
        %s440 = scalar_lea.vmem [#allocation8], 112
        %s441 = scalar_lea.vmem [#allocation8], 120
        %442 = vxpose.xlu0.b32.start [1/16] %v423, 128
        %443 = vxpose.xlu0.b32.cont [2/16] %v425, 128
        %444 = vxpose.xlu0.b32.cont [3/16] %v427, 128
        %445 = vxpose.xlu0.b32.cont [4/16] %v429, 128
        %446 = vxpose.xlu0.b32.cont [5/16] 0, 128
        %447 = vxpose.xlu0.b32.cont [6/16] 0, 128
        %448 = vxpose.xlu0.b32.cont [7/16] 0, 128
        %449 = vxpose.xlu0.b32.cont [8/16] 0, 128
        %450 = vxpose.xlu0.b32.cont [9/16] 0, 128
        %451 = vxpose.xlu0.b32.cont [10/16] 0, 128
        %452 = vxpose.xlu0.b32.cont [11/16] 0, 128
        %453 = vxpose.xlu0.b32.cont [12/16] 0, 128
        %454 = vxpose.xlu0.b32.cont [13/16] 0, 128
        %455 = vxpose.xlu0.b32.cont [14/16] 0, 128
        %456 = vxpose.xlu0.b32.cont [15/16] 0, 128
        %457 = vxpose.xlu0.b32.end [16/16] 0, 128
        %v458 = vpop.trf.xlu0
        %v459 = vpop.trf.xlu0
        %v460 = vpop.trf.xlu0
        %v461 = vpop.trf.xlu0
        %v462 = vpop.trf.xlu0
        %v463 = vpop.trf.xlu0
        %v464 = vpop.trf.xlu0
        %v465 = vpop.trf.xlu0
        %v466 = vpop.trf.xlu0
        %v467 = vpop.trf.xlu0
        %v468 = vpop.trf.xlu0
        %v469 = vpop.trf.xlu0
        %v470 = vpop.trf.xlu0
        %v471 = vpop.trf.xlu0
        %v472 = vpop.trf.xlu0
        %v473 = vpop.trf.xlu0
        %474 = vst [vmem:[%s168] sm:$0x1] %v458
        %s476 = ssub.s32 16, 1
        %v477 = vld [vmem:[#allocation2] sm:%s476]
        %s479 = ssub.s32 16, 1
        %480 = vst [vmem:[%s141] sm:%s479] %v477
        %s482 = ssub.s32 16, 1
        %v483 = vld [vmem:[#allocation5] sm:%s482]
        %s485 = ssub.s32 16, 1
        %486 = vst [vmem:[%s148] sm:%s485] %v483
        %s487 = sand.u32 %s17, 1
        %s488 = sand.u32 %s17, 1
        %s489 = smul.addr %s488, 32
        %s490 = scalar_lea.vmem [#allocation1], %s489
        %s491 = sand.u32 %s27, 1
        %s492 = scalar_lea.sflag [#allocation4], %s491
        %s493 = sand.u32 %s27, 1
        %s494 = smul.addr %s493, 4
        %s495 = scalar_lea.vmem [#allocation3], %s494
        %s496 = sand.u32 %s55, 1
        %s497 = scalar_lea.sflag [#allocation7], %s496
        %s498 = sand.u32 %s55, 1
        %s499 = smul.addr %s498, 4
        %s500 = scalar_lea.vmem [#allocation6], %s499
        %s501 = smul.addr %s17, 32
        %s502 = scalar_lea.vmem %s1, %s501
        // Predicated region
        $region54: #{custom-call.5} parent=38 // pred_check
          _
        $region55: #{custom-call.5} parent=38 // pred_check_branch
          %504 = sbr.rel (0) target = $region57
        $region56: #{custom-call.5} parent=38 // pred_region
          // Predicated region
          $region58: #{custom-call.5} parent=56 // pred_check
            _
          $region59: #{custom-call.5} parent=56 // pred_check_branch
            %506 = sbr.rel (0) target = $region61
          $region60: #{custom-call.5} parent=56 // pred_region
            loop: start=0, step=1, limit=1
            $region62: #{custom-call.5} parent=60 // loop_pre_header
              _
            $region63: #{custom-call.5} parent=60 // loop_header
              %s508 = sphi 0, %s512
              %p509 = scmp.ge.s32.totalorder %s508, 1
              %s513 = sphi %s490, %s490
              %s514 = sphi %s502, %s502
            $region64: #{custom-call.5} parent=60 // loop_header_branch
              %511 = sbr.rel (%p509) target = $region68
            $region65: #{custom-call.5} parent=60 // loop_body
              %v515 = vld [vmem:[%s513] sm:$0xff]
              %516 = vst [vmem:[%s514] sm:$0xff] %v515
              %v517 = vld [vmem:[%s513 + $0x8] sm:$0xff]
              %518 = vst [vmem:[%s514 + $0x8] sm:$0xff] %v517
              %v519 = vld [vmem:[%s513 + $0x10] sm:$0xff]
              %520 = vst [vmem:[%s514 + $0x10] sm:$0xff] %v519
              %v521 = vld [vmem:[%s513 + $0x18] sm:$0xff]
              %522 = vst [vmem:[%s514 + $0x18] sm:$0xff] %v521
            $region66: #{custom-call.5} parent=60 // loop_footer
              %s512 = sadd.s32 1, %s508
            $region67: #{custom-call.5} parent=60 // loop_footer_branch
              %507 = sbr.rel target = $region63
            $region68: #{custom-call.5} parent=60 // loop_exit
              _
          $region61: #{custom-call.5} parent=56 // pred_fallthru
            _
          // Predicated region
          $region69: #{custom-call.5} parent=56 // pred_check
            _
          $region70: #{custom-call.5} parent=56 // pred_check_branch
            %524 = sbr.rel target = $region72
          $region71: #{custom-call.5} parent=56 // pred_region
            _
          $region72: #{custom-call.5} parent=56 // pred_fallthru
            _
        $region57: #{custom-call.5} parent=38 // pred_fallthru
          _
        %525 = vnop
        // Predicated region
        $region73: #{custom-call.5} parent=38 // pred_check
          %p526 = pneg %p37
        $region74: #{custom-call.5} parent=38 // pred_check_branch
          %528 = sbr.rel (%p526) target = $region76
        $region75: #{custom-call.5} parent=38 // pred_region
          %s529 = sshrl.u32 %s17, 3
          %531 = vsyncadd %s492, 0
          %s532 = smul.addr %s529, 4
          %s533 = scalar_lea.hbm %s2, %s532
          %s535 = sshll.u32 %s495, 4
          %s536 = int_to_ptr.vmem [resolvable:$true] %s535
          %s537 = sshll.u32 %s533, 4
          %s538 = int_to_ptr.hbm [resolvable:$true] %s537
          %540 = dma.vmem_to_hbm [thread:$0]  %s536, 64, %s538, %s492
        $region76: #{custom-call.5} parent=38 // pred_fallthru
          _
        // Predicated region
        $region77: #{custom-call.5} parent=38 // pred_check
          %p541 = pneg %p65
        $region78: #{custom-call.5} parent=38 // pred_check_branch
          %543 = sbr.rel (%p541) target = $region80
        $region79: #{custom-call.5} parent=38 // pred_region
          %s544 = sshrl.u32 %s17, 3
          %546 = vsyncadd %s497, 0
          %s547 = smul.addr %s544, 4
          %s548 = scalar_lea.hbm %s3, %s547
          %s550 = sshll.u32 %s500, 4
          %s551 = int_to_ptr.vmem [resolvable:$true] %s550
          %s552 = sshll.u32 %s548, 4
          %s553 = int_to_ptr.hbm [resolvable:$true] %s552
          %555 = dma.vmem_to_hbm [thread:$0]  %s551, 64, %s553, %s497
        $region80: #{custom-call.5} parent=38 // pred_fallthru
          _
      $region39: #{custom-call.5} parent=5 // pred_fallthru
        _
      %p556 = scmp.le.s32.totalorder 2, %s12
      // Predicated region
      $region81: #{custom-call.5} parent=5 // pred_check
        %p557 = pneg %p556
      $region82: #{custom-call.5} parent=5 // pred_check_branch
        %559 = sbr.rel (%p557) target = $region84
      $region83: #{custom-call.5} parent=5 // pred_region
        %s560 = ssub.s32 %s12, 2
        %s561 = sand.u32 %s18, 1
        %s562 = sand.u32 %s18, 1
        %s563 = smul.addr %s562, 32
        %s564 = scalar_lea.vmem [#allocation1], %s563
        // Predicated region
        $region85: #{custom-call.5} parent=83 // pred_check
          %p565 = pneg %p43
        $region86: #{custom-call.5} parent=83 // pred_check_branch
          %567 = sbr.rel (%p565) target = $region88
        $region87: #{custom-call.5} parent=83 // pred_region
          %s568 = sand.u32 %s28, 1
          %s569 = scalar_lea.sflag [#allocation4], %s568
          %s570 = sand.u32 %s28, 1
          %s571 = smul.addr %s570, 4
          %s572 = scalar_lea.vmem [#allocation3], %s571
          %574 = dma.done %s569, 64
        $region88: #{custom-call.5} parent=83 // pred_fallthru
          _
        // Predicated region
        $region89: #{custom-call.5} parent=83 // pred_check
          %p575 = pneg %p71
        $region90: #{custom-call.5} parent=83 // pred_check_branch
          %577 = sbr.rel (%p575) target = $region92
        $region91: #{custom-call.5} parent=83 // pred_region
          %s578 = sand.u32 %s56, 1
          %s579 = scalar_lea.sflag [#allocation7], %s578
          %s580 = sand.u32 %s56, 1
          %s581 = smul.addr %s580, 4
          %s582 = scalar_lea.vmem [#allocation6], %s581
          %584 = dma.done %s579, 64
        $region92: #{custom-call.5} parent=83 // pred_fallthru
          _
      $region84: #{custom-call.5} parent=5 // pred_fallthru
        _
    $region6: #{custom-call.5} parent=1 // loop_footer
      %s16 = sadd.s32 1, %s12
    $region7: #{custom-call.5} parent=1 // loop_footer_branch
      %11 = sbr.rel target = $region3
    $region8: #{custom-call.5} parent=1 // loop_exit
      _
    %585 = vsyncpa [#allocation4], 1
    %s586 = scalar_lea.sflag [#allocation4], 1
    %587 = vsyncpa %s586, 1
    %588 = vsyncpa [#allocation7], 1
    %s589 = scalar_lea.sflag [#allocation7], 1
    %590 = vsyncpa %s589, 1

// kernel: custom-call.4
$region0: #{custom-call.4}
  %s0 = inlined_call_operand.vmem [shape: f32[32,32], index: 0, kind: input, shape index: {}]
  %s1 = inlined_call_operand.vmem [shape: f32[32,32], index: 1, kind: output, shape index: {0}]
  %s2 = inlined_call_operand.hbm [shape: s32[32], index: 2, kind: output, shape index: {1}]
  %s3 = inlined_call_operand.hbm [shape: s32[32], index: 3, kind: output, shape index: {2}]
  %4 = xla_tuple %s1, %s2, %s3
  $region1: #{custom-call.4} parent=0
    #allocation0 [shape = 'u8[16384]{0}', space=vmem, size = 0x4000, scoped, tag = 'operand span for operand 0']
    #allocation1 [shape = 'u8[16384]{0}', space=vmem, size = 0x4000, scoped, tag = 'operand span for operand 1']
    #allocation2 [shape = 'u8[4096]{0}', space=vmem, size = 0x1000, scoped, tag = 'operand span for operand 2']
    #allocation3 [shape = 'u8[512]{0}', space=vmem, size = 0x400, scoped, tag = 'packed  for operand 2']
    #allocation4 [shape = 's32[1]{0}', space=sflag, size = 0x4, scoped, tag = 'scoped memory for custom-call.4']
    #allocation5 [shape = 'u8[4096]{0}', space=vmem, size = 0x1000, scoped, tag = 'operand span for operand 3']
    #allocation6 [shape = 'u8[512]{0}', space=vmem, size = 0x400, scoped, tag = 'packed  for operand 3']
    #allocation7 [shape = 's32[1]{0}', space=sflag, size = 0x4, scoped, tag = 'scoped memory for custom-call.4']
    #allocation8 [shape = 's32[32,128]{1,0}', space=vmem, size = 0x4000, scoped, tag = 'scratch for permutations']
    %5 = vsyncpa [#allocation4], 0
    %6 = vsyncpa [#allocation7], 0
    // Predicated region
    $region2: #{custom-call.4} parent=1 // pred_check
      _
    $region3: #{custom-call.4} parent=1 // pred_check_branch
      %8 = sbr.rel (0) target = $region5
    $region4: #{custom-call.4} parent=1 // pred_region
      %p10 = scmp.gt.s32.totalorder 4, 0
      // Predicated region
      $region6: #{custom-call.4} parent=4 // pred_check
        %p11 = pneg %p10
      $region7: #{custom-call.4} parent=4 // pred_check_branch
        %13 = sbr.rel (%p11) target = $region9
      $region8: #{custom-call.4} parent=4 // pred_region
        %s14 = ssub.s32 4, 1
        %s15 = smul.u32 %s14, 8
        %s16 = scalar_lea.vmem %s0, %s15
        %v17 = vld [vmem:[%s0] sm:$0xff]
        // While loop
        $region10: #{custom-call.4} parent=8 // loop_pre_header
          _
        $region11: #{custom-call.4} parent=8 // loop_header
          %s18 = sphi %s0, %s40
          %s19 = sphi [#allocation0], %s41
          %v20 = vphi %v17, %v42
          %s21 = ssub.s32 %s16, 64
          %p22 = scmp.gt.s32.totalorder %s18, %s21
        $region12: #{custom-call.4} parent=8 // loop_header_branch
          %24 = sbr.rel (%p22) target = $region16
        $region13: #{custom-call.4} parent=8 // loop_body
          %25 = vst [vmem:[%s19] sm:$0xff] %v20
          %v26 = vld [vmem:[%s18 + $0x8] sm:$0xff]
          %27 = vst [vmem:[%s19 + $0x8] sm:$0xff] %v26
          %v28 = vld [vmem:[%s18 + $0x10] sm:$0xff]
          %29 = vst [vmem:[%s19 + $0x10] sm:$0xff] %v28
          %v30 = vld [vmem:[%s18 + $0x18] sm:$0xff]
          %31 = vst [vmem:[%s19 + $0x18] sm:$0xff] %v30
          %v32 = vld [vmem:[%s18 + $0x20] sm:$0xff]
          %33 = vst [vmem:[%s19 + $0x20] sm:$0xff] %v32
          %v34 = vld [vmem:[%s18 + $0x28] sm:$0xff]
          %35 = vst [vmem:[%s19 + $0x28] sm:$0xff] %v34
          %v36 = vld [vmem:[%s18 + $0x30] sm:$0xff]
          %37 = vst [vmem:[%s19 + $0x30] sm:$0xff] %v36
          %v38 = vld [vmem:[%s18 + $0x38] sm:$0xff]
          %39 = vst [vmem:[%s19 + $0x38] sm:$0xff] %v38
        $region14: #{custom-call.4} parent=8 // loop_footer
          %s40 = scalar_lea.vmem %s18, 64
          %s41 = scalar_lea.vmem %s19, 64
          %v42 = vld [vmem:[%s18 + $0x40] sm:$0xff]
        $region15: #{custom-call.4} parent=8 // loop_footer_branch
          %43 = sbr.rel target = $region11
        $region16: #{custom-call.4} parent=8 // loop_exit
          _
        // While loop
        $region17: #{custom-call.4} parent=8 // loop_pre_header
          _
        $region18: #{custom-call.4} parent=8 // loop_header
          %s44 = sphi %s18, %s52
          %s45 = sphi %s19, %s53
          %v46 = vphi %v20, %v46
          %p47 = scmp.gt.s32.totalorder %s44, %s16
        $region19: #{custom-call.4} parent=8 // loop_header_branch
          %49 = sbr.rel (%p47) target = $region23
        $region20: #{custom-call.4} parent=8 // loop_body
          %v50 = vld [vmem:[%s44] sm:$0xff]
          %51 = vst [vmem:[%s45] sm:$0xff] %v50
        $region21: #{custom-call.4} parent=8 // loop_footer
          %s52 = scalar_lea.vmem %s44, 8
          %s53 = scalar_lea.vmem %s45, 8
        $region22: #{custom-call.4} parent=8 // loop_footer_branch
          %54 = sbr.rel target = $region18
        $region23: #{custom-call.4} parent=8 // loop_exit
          _
      $region9: #{custom-call.4} parent=4 // pred_fallthru
        _
      %s56 = ssub.s32 1, 1
      %s57 = smul.u32 4, 8
      %s58 = scalar_lea.vmem [#allocation0], %s57
      %s59 = smul.u32 4, 8
      %s60 = scalar_lea.vmem %s0, %s59
      %v61 = vld [vmem:[%s60] sm:%s56]
      %62 = vst [vmem:[%s58] sm:%s56] %v61
    $region5: #{custom-call.4} parent=1 // pred_fallthru
      _
    %v63 = vld [vmem:[#allocation0] sm:$0xff]
    %64 = vst [vmem:[#allocation1] sm:$0xff] %v63
    %s65 = scalar_lea.vmem [#allocation1], 8
    %s66 = scalar_lea.vmem [#allocation0], 8
    %v67 = vld [vmem:[%s66] sm:$0xff]
    %68 = vst [vmem:[%s65] sm:$0xff] %v67
    %s69 = scalar_lea.vmem [#allocation1], 16
    %s70 = scalar_lea.vmem [#allocation0], 16
    %v71 = vld [vmem:[%s70] sm:$0xff]
    %72 = vst [vmem:[%s69] sm:$0xff] %v71
    %s73 = scalar_lea.vmem [#allocation1], 24
    %s74 = scalar_lea.vmem [#allocation0], 24
    %v75 = vld [vmem:[%s74] sm:$0xff]
    %76 = vst [vmem:[%s73] sm:$0xff] %v75
    %77 = vst [vmem:[#allocation2] sm:$0x1] 0
    %v78 = vlaneseq
    %v79 = vshrl.u32 %v78, 7
    %v80 = vmov %v79
    loop: start=0, step=1, limit=4
    $region24: #{custom-call.4} parent=1 // loop_pre_header
      _
    $region25: #{custom-call.4} parent=1 // loop_header
      %s82 = sphi 0, %s86
      %p83 = scmp.ge.s32.totalorder %s82, 4
    $region26: #{custom-call.4} parent=1 // loop_header_branch
      %85 = sbr.rel (%p83) target = $region30
    $region27: #{custom-call.4} parent=1 // loop_body
      %s87 = smul.addr %s82, 8
      %s88 = scalar_lea.vmem [#allocation8], %s87
      %s89 = smul.u32 %s82, 8
      %v90 = vstv %s89
      %v91 = vadd.s32 %v80, %v90
      %92 = vst [vmem:[%s88] sm:$0xff] %v91
    $region28: #{custom-call.4} parent=1 // loop_footer
      %s86 = sadd.s32 1, %s82
    $region29: #{custom-call.4} parent=1 // loop_footer_branch
      %81 = sbr.rel target = $region25
    $region30: #{custom-call.4} parent=1 // loop_exit
      _
    loop: start=0, step=1, limit=32
    $region31: #{custom-call.4} parent=1 // loop_pre_header
      _
    $region32: #{custom-call.4} parent=1 // loop_header
      %s94 = sphi 0, %s98
      %p95 = scmp.ge.s32.totalorder %s94, 32
    $region33: #{custom-call.4} parent=1 // loop_header_branch
      %97 = sbr.rel (%p95) target = $region37
    $region34: #{custom-call.4} parent=1 // loop_body
      %v99 = vstv %s94
      %v100 = vlaneseq
      %v101 = vshrl.u32 %v100, 7
      %v102 = vmov %v101
      %v103 = vld [vmem:[#allocation1] sm:$0xff]
      %v104 = vand.u32 2147483647, %v103
      %v106 = vstv %s94
      %vm107 = vcmp.ge.s32.totalorder %v102, %v106
      %vm108 = vcmp.lt.s32.totalorder %v102, 32
      %vm109 = vmand %vm107, %vm108
      %vm110 = vcmp.lt.f32.partialorder -inf, %v104
      %vm111 = vmand %vm109, %vm110
      %v112 = vsel %vm111, %v102, %v99
      %v113 = vsel %vm111, %v104, -inf
      %s114 = scalar_lea.vmem [#allocation1], 8
      %v115 = vld [vmem:[%s114] sm:$0xff]
      %v116 = vand.u32 2147483647, %v115
      %v117 = vadd.s32 %v102, 8
      %v118 = vstv %s94
      %vm119 = vcmp.ge.s32.totalorder %v117, %v118
      %vm120 = vcmp.lt.s32.totalorder %v117, 32
      %vm121 = vmand %vm119, %vm120
      %vm122 = vcmp.lt.f32.partialorder %v113, %v116
      %vm123 = vmand %vm121, %vm122
      %v124 = vsel %vm123, %v117, %v112
      %v125 = vsel %vm123, %v116, %v113
      %s126 = scalar_lea.vmem [#allocation1], 16
      %v127 = vld [vmem:[%s126] sm:$0xff]
      %v128 = vand.u32 2147483647, %v127
      %v129 = vadd.s32 %v102, 16
      %v130 = vstv %s94
      %vm131 = vcmp.ge.s32.totalorder %v129, %v130
      %vm132 = vcmp.lt.s32.totalorder %v129, 32
      %vm133 = vmand %vm131, %vm132
      %vm134 = vcmp.lt.f32.partialorder %v125, %v128
      %vm135 = vmand %vm133, %vm134
      %v136 = vsel %vm135, %v129, %v124
      %v137 = vsel %vm135, %v128, %v125
      %s138 = scalar_lea.vmem [#allocation1], 24
      %v139 = vld [vmem:[%s138] sm:$0xff]
      %v140 = vand.u32 2147483647, %v139
      %v141 = vadd.s32 %v102, 24
      %v142 = vstv %s94
      %vm143 = vcmp.ge.s32.totalorder %v141, %v142
      %vm144 = vcmp.lt.s32.totalorder %v141, 32
      %vm145 = vmand %vm143, %vm144
      %vm146 = vcmp.lt.f32.partialorder %v137, %v140
      %vm147 = vmand %vm145, %vm146
      %v148 = vsel %vm147, %v141, %v136
      %v149 = vsel %vm147, %v140, %v137
      %v150 = vrot.slane %v149, 1
      %v151 = vrot.slane %v148, 1
      %vm152 = vcmp.ge.f32.partialorder %v150, %v149
      %v153 = vsel %vm152, %v150, %v149
      %v154 = vsel %vm152, %v151, %v148
      %v155 = vrot.slane %v150, 1
      %v156 = vrot.slane %v151, 1
      %vm157 = vcmp.ge.f32.partialorder %v155, %v153
      %v158 = vsel %vm157, %v155, %v153
      %v159 = vsel %vm157, %v156, %v154
      %v160 = vrot.slane %v155, 1
      %v161 = vrot.slane %v156, 1
      %vm162 = vcmp.ge.f32.partialorder %v160, %v158
      %v163 = vsel %vm162, %v160, %v158
      %v164 = vsel %vm162, %v161, %v159
      %v165 = vrot.slane %v160, 1
      %v166 = vrot.slane %v161, 1
      %vm167 = vcmp.ge.f32.partialorder %v165, %v163
      %v168 = vsel %vm167, %v165, %v163
      %v169 = vsel %vm167, %v166, %v164
      %v170 = vrot.slane %v165, 1
      %v171 = vrot.slane %v166, 1
      %vm172 = vcmp.ge.f32.partialorder %v170, %v168
      %v173 = vsel %vm172, %v170, %v168
      %v174 = vsel %vm172, %v171, %v169
      %v175 = vrot.slane %v170, 1
      %v176 = vrot.slane %v171, 1
      %vm177 = vcmp.ge.f32.partialorder %v175, %v173
      %v178 = vsel %vm177, %v175, %v173
      %v179 = vsel %vm177, %v176, %v174
      %v180 = vrot.slane %v175, 1
      %v181 = vrot.slane %v176, 1
      %vm182 = vcmp.ge.f32.partialorder %v180, %v178
      %v183 = vsel %vm182, %v180, %v178
      %v184 = vsel %vm182, %v181, %v179
      %s185 = ssub.s32 128, %s94
      %186 = vrot.lane.b32.xlu0 %v184, %s185
      %v187 = vpop.permute.xlu0 %186
      %s188 = vtos %v187
      %v189 = vstv %s94
      %v190 = vlaneseq
      %v191 = vand.u32 %v190, 127
      %vm192 = vcmp.eq.s32.totalorder %v191, %v189
      %v193 = vstv %s188
      %v194 = vld [vmem:[#allocation2] ss:$0 sm:$0xff]
      %v195 = vsel %vm192, %v193, %v194
      %196 = vst [vmem:[#allocation2] sm:$0x1] %v195
      %s197 = scalar_lea.vmem [#allocation1], %s94
      %s198 = scalar_lea.vmem [#allocation1], %s188
      %v199 = vld [vmem:[%s197] ss:$0 sm:$0xff]
      %v200 = vld [vmem:[%s198] ss:$0 sm:$0xff]
      %201 = vst [vmem:[%s198] sm:$0x1] %v199
      %202 = vst [vmem:[%s197] sm:$0x1] %v200
      %s203 = scalar_lea.vmem [#allocation8], %s94
      %s204 = scalar_lea.vmem [#allocation8], %s188
      %v205 = vld [vmem:[%s203] ss:$0 sm:$0xff]
      %v206 = vld [vmem:[%s204] ss:$0 sm:$0xff]
      %207 = vst [vmem:[%s204] sm:$0x1] %v205
      %208 = vst [vmem:[%s203] sm:$0x1] %v206
      %vm209 = vcmp.ne.f32.partialorder %v200, 0.0
      %vm210 = vmand %vm192, %vm209
      %v211 = vsel %vm210, %v200, 1.0
      %v212 = vlaneseq
      %v213 = vand.u32 %v212, 127
      %v214 = vstv %s94
      %vm215 = vcmp.gt.s32.totalorder %v213, %v214
      %v216 = vsel %vm215, %v200, 0.0
      %v217 = vlaneseq
      %v218 = vshrl.u32 %v217, 7
      %v219 = vmov %v218
      %v220 = vld [vmem:[#allocation1] sm:$0xff]
      %v222 = vstv %s94
      %vm223 = vcmp.gt.s32.totalorder %v219, %v222
      %v224 = vsel %vm223, %v211, 1.0
      %v225 = vrcp.pop %v224
      %v226 = vmul.f32 %v224, %v225
      %v227 = vsub.f32 1.0, %v226
      %v228 = vmul.f32 %v225, %v227
      %v229 = vadd.f32 %v225, %v228
      %vm230 = vweird.f32 %v224
      %vm231 = vweird.f32 %v225
      %vm232 = vmor %vm230, %vm231
      %v233 = vsel %vm232, %v225, %v229
      %v234 = vand.u32 2147483647, %v224
      %vm235 = vcmp.eq.f32.partialorder %v234, 8.507059e+37
      %v236 = vand.u32 %v224, 2147483648
      %v237 = vor.u32 1.1754944e-38, %v236
      %v238 = vsel %vm235, %v237, %v233
      %v239 = vmul.f32 %v220, %v238
      %vm240 = vmand %vm223, %vm192
      %v241 = vsel %vm240, %v239, 0.0
      %242 = vadd.xlane.f32.xlu0 %v241
      %v243 = vpop.xlane.xlu0 %242
      %v244 = vmul.f32 %v243, %v216
      %v245 = vsub.f32 %v239, %v244
      %246 = vst [vmem:[#allocation1] sm:$0xff] %v245
      %s247 = scalar_lea.vmem [#allocation1], 8
      %v248 = vld [vmem:[%s247] sm:$0xff]
      %v249 = vadd.s32 %v219, 8
      %v250 = vstv %s94
      %vm251 = vcmp.gt.s32.totalorder %v249, %v250
      %v252 = vsel %vm251, %v211, 1.0
      %v253 = vrcp.pop %v252
      %v254 = vmul.f32 %v252, %v253
      %v255 = vsub.f32 1.0, %v254
      %v256 = vmul.f32 %v253, %v255
      %v257 = vadd.f32 %v253, %v256
      %vm258 = vweird.f32 %v252
      %vm259 = vweird.f32 %v253
      %vm260 = vmor %vm258, %vm259
      %v261 = vsel %vm260, %v253, %v257
      %v262 = vand.u32 2147483647, %v252
      %vm263 = vcmp.eq.f32.partialorder %v262, 8.507059e+37
      %v264 = vand.u32 %v252, 2147483648
      %v265 = vor.u32 1.1754944e-38, %v264
      %v266 = vsel %vm263, %v265, %v261
      %v267 = vmul.f32 %v248, %v266
      %vm268 = vmand %vm251, %vm192
      %v269 = vsel %vm268, %v267, 0.0
      %270 = vadd.xlane.f32.xlu0 %v269
      %v271 = vpop.xlane.xlu0 %270
      %v272 = vmul.f32 %v271, %v216
      %v273 = vsub.f32 %v267, %v272
      %274 = vst [vmem:[%s247] sm:$0xff] %v273
      %s275 = scalar_lea.vmem [#allocation1], 16
      %v276 = vld [vmem:[%s275] sm:$0xff]
      %v277 = vadd.s32 %v219, 16
      %v278 = vstv %s94
      %vm279 = vcmp.gt.s32.totalorder %v277, %v278
      %v280 = vsel %vm279, %v211, 1.0
      %v281 = vrcp.pop %v280
      %v282 = vmul.f32 %v280, %v281
      %v283 = vsub.f32 1.0, %v282
      %v284 = vmul.f32 %v281, %v283
      %v285 = vadd.f32 %v281, %v284
      %vm286 = vweird.f32 %v280
      %vm287 = vweird.f32 %v281
      %vm288 = vmor %vm286, %vm287
      %v289 = vsel %vm288, %v281, %v285
      %v290 = vand.u32 2147483647, %v280
      %vm291 = vcmp.eq.f32.partialorder %v290, 8.507059e+37
      %v292 = vand.u32 %v280, 2147483648
      %v293 = vor.u32 1.1754944e-38, %v292
      %v294 = vsel %vm291, %v293, %v289
      %v295 = vmul.f32 %v276, %v294
      %vm296 = vmand %vm279, %vm192
      %v297 = vsel %vm296, %v295, 0.0
      %298 = vadd.xlane.f32.xlu0 %v297
      %v299 = vpop.xlane.xlu0 %298
      %v300 = vmul.f32 %v299, %v216
      %v301 = vsub.f32 %v295, %v300
      %302 = vst [vmem:[%s275] sm:$0xff] %v301
      %s303 = scalar_lea.vmem [#allocation1], 24
      %v304 = vld [vmem:[%s303] sm:$0xff]
      %v305 = vadd.s32 %v219, 24
      %v306 = vstv %s94
      %vm307 = vcmp.gt.s32.totalorder %v305, %v306
      %v308 = vsel %vm307, %v211, 1.0
      %v309 = vrcp.pop %v308
      %v310 = vmul.f32 %v308, %v309
      %v311 = vsub.f32 1.0, %v310
      %v312 = vmul.f32 %v309, %v311
      %v313 = vadd.f32 %v309, %v312
      %vm314 = vweird.f32 %v308
      %vm315 = vweird.f32 %v309
      %vm316 = vmor %vm314, %vm315
      %v317 = vsel %vm316, %v309, %v313
      %v318 = vand.u32 2147483647, %v308
      %vm319 = vcmp.eq.f32.partialorder %v318, 8.507059e+37
      %v320 = vand.u32 %v308, 2147483648
      %v321 = vor.u32 1.1754944e-38, %v320
      %v322 = vsel %vm319, %v321, %v317
      %v323 = vmul.f32 %v304, %v322
      %vm324 = vmand %vm307, %vm192
      %v325 = vsel %vm324, %v323, 0.0
      %326 = vadd.xlane.f32.xlu0 %v325
      %v327 = vpop.xlane.xlu0 %326
      %v328 = vmul.f32 %v327, %v216
      %v329 = vsub.f32 %v323, %v328
      %330 = vst [vmem:[%s303] sm:$0xff] %v329
    $region35: #{custom-call.4} parent=1 // loop_footer
      %s98 = sadd.s32 1, %s94
    $region36: #{custom-call.4} parent=1 // loop_footer_branch
      %93 = sbr.rel target = $region32
    $region37: #{custom-call.4} parent=1 // loop_exit
      _
    %v331 = vld [vmem:[#allocation8] sm:$0xff]
    %s332 = scalar_lea.vmem [#allocation8], 8
    %v333 = vld [vmem:[%s332] sm:$0xff]
    %s334 = scalar_lea.vmem [#allocation8], 16
    %v335 = vld [vmem:[%s334] sm:$0xff]
    %s336 = scalar_lea.vmem [#allocation8], 24
    %v337 = vld [vmem:[%s336] sm:$0xff]
    %s338 = scalar_lea.vmem [#allocation8], 32
    %s339 = scalar_lea.vmem [#allocation8], 40
    %s340 = scalar_lea.vmem [#allocation8], 48
    %s341 = scalar_lea.vmem [#allocation8], 56
    %s342 = scalar_lea.vmem [#allocation8], 64
    %s343 = scalar_lea.vmem [#allocation8], 72
    %s344 = scalar_lea.vmem [#allocation8], 80
    %s345 = scalar_lea.vmem [#allocation8], 88
    %s346 = scalar_lea.vmem [#allocation8], 96
    %s347 = scalar_lea.vmem [#allocation8], 104
    %s348 = scalar_lea.vmem [#allocation8], 112
    %s349 = scalar_lea.vmem [#allocation8], 120
    %350 = vxpose.xlu0.b32.start [1/16] %v331, 128
    %351 = vxpose.xlu0.b32.cont [2/16] %v333, 128
    %352 = vxpose.xlu0.b32.cont [3/16] %v335, 128
    %353 = vxpose.xlu0.b32.cont [4/16] %v337, 128
    %354 = vxpose.xlu0.b32.cont [5/16] 0, 128
    %355 = vxpose.xlu0.b32.cont [6/16] 0, 128
    %356 = vxpose.xlu0.b32.cont [7/16] 0, 128
    %357 = vxpose.xlu0.b32.cont [8/16] 0, 128
    %358 = vxpose.xlu0.b32.cont [9/16] 0, 128
    %359 = vxpose.xlu0.b32.cont [10/16] 0, 128
    %360 = vxpose.xlu0.b32.cont [11/16] 0, 128
    %361 = vxpose.xlu0.b32.cont [12/16] 0, 128
    %362 = vxpose.xlu0.b32.cont [13/16] 0, 128
    %363 = vxpose.xlu0.b32.cont [14/16] 0, 128
    %364 = vxpose.xlu0.b32.cont [15/16] 0, 128
    %365 = vxpose.xlu0.b32.end [16/16] 0, 128
    %v366 = vpop.trf.xlu0
    %v367 = vpop.trf.xlu0
    %v368 = vpop.trf.xlu0
    %v369 = vpop.trf.xlu0
    %v370 = vpop.trf.xlu0
    %v371 = vpop.trf.xlu0
    %v372 = vpop.trf.xlu0
    %v373 = vpop.trf.xlu0
    %v374 = vpop.trf.xlu0
    %v375 = vpop.trf.xlu0
    %v376 = vpop.trf.xlu0
    %v377 = vpop.trf.xlu0
    %v378 = vpop.trf.xlu0
    %v379 = vpop.trf.xlu0
    %v380 = vpop.trf.xlu0
    %v381 = vpop.trf.xlu0
    %382 = vst [vmem:[#allocation5] sm:$0x1] %v366
    %s384 = ssub.s32 2, 1
    %v385 = vld [vmem:[#allocation2] sm:%s384]
    %s387 = ssub.s32 2, 1
    %388 = vst [vmem:[#allocation3] sm:%s387] %v385
    %s390 = ssub.s32 2, 1
    %v391 = vld [vmem:[#allocation5] sm:%s390]
    %s393 = ssub.s32 2, 1
    %394 = vst [vmem:[#allocation6] sm:%s393] %v391
    // Predicated region
    $region38: #{custom-call.4} parent=1 // pred_check
      _
    $region39: #{custom-call.4} parent=1 // pred_check_branch
      %396 = sbr.rel (0) target = $region41
    $region40: #{custom-call.4} parent=1 // pred_region
      %p398 = scmp.gt.s32.totalorder 4, 0
      // Predicated region
      $region42: #{custom-call.4} parent=40 // pred_check
        %p399 = pneg %p398
      $region43: #{custom-call.4} parent=40 // pred_check_branch
        %401 = sbr.rel (%p399) target = $region45
      $region44: #{custom-call.4} parent=40 // pred_region
        %s402 = ssub.s32 4, 1
        %s403 = smul.u32 %s402, 8
        %s404 = scalar_lea.vmem [#allocation1], %s403
        %v405 = vld [vmem:[#allocation1] sm:$0xff]
        // While loop
        $region46: #{custom-call.4} parent=44 // loop_pre_header
          _
        $region47: #{custom-call.4} parent=44 // loop_header
          %s406 = sphi [#allocation1], %s428
          %s407 = sphi %s1, %s429
          %v408 = vphi %v405, %v430
          %s409 = ssub.s32 %s404, 64
          %p410 = scmp.gt.s32.totalorder %s406, %s409
        $region48: #{custom-call.4} parent=44 // loop_header_branch
          %412 = sbr.rel (%p410) target = $region52
        $region49: #{custom-call.4} parent=44 // loop_body
          %413 = vst [vmem:[%s407] sm:$0xff] %v408
          %v414 = vld [vmem:[%s406 + $0x8] sm:$0xff]
          %415 = vst [vmem:[%s407 + $0x8] sm:$0xff] %v414
          %v416 = vld [vmem:[%s406 + $0x10] sm:$0xff]
          %417 = vst [vmem:[%s407 + $0x10] sm:$0xff] %v416
          %v418 = vld [vmem:[%s406 + $0x18] sm:$0xff]
          %419 = vst [vmem:[%s407 + $0x18] sm:$0xff] %v418
          %v420 = vld [vmem:[%s406 + $0x20] sm:$0xff]
          %421 = vst [vmem:[%s407 + $0x20] sm:$0xff] %v420
          %v422 = vld [vmem:[%s406 + $0x28] sm:$0xff]
          %423 = vst [vmem:[%s407 + $0x28] sm:$0xff] %v422
          %v424 = vld [vmem:[%s406 + $0x30] sm:$0xff]
          %425 = vst [vmem:[%s407 + $0x30] sm:$0xff] %v424
          %v426 = vld [vmem:[%s406 + $0x38] sm:$0xff]
          %427 = vst [vmem:[%s407 + $0x38] sm:$0xff] %v426
        $region50: #{custom-call.4} parent=44 // loop_footer
          %s428 = scalar_lea.vmem %s406, 64
          %s429 = scalar_lea.vmem %s407, 64
          %v430 = vld [vmem:[%s406 + $0x40] sm:$0xff]
        $region51: #{custom-call.4} parent=44 // loop_footer_branch
          %431 = sbr.rel target = $region47
        $region52: #{custom-call.4} parent=44 // loop_exit
          _
        // While loop
        $region53: #{custom-call.4} parent=44 // loop_pre_header
          _
        $region54: #{custom-call.4} parent=44 // loop_header
          %s432 = sphi %s406, %s440
          %s433 = sphi %s407, %s441
          %v434 = vphi %v408, %v434
          %p435 = scmp.gt.s32.totalorder %s432, %s404
        $region55: #{custom-call.4} parent=44 // loop_header_branch
          %437 = sbr.rel (%p435) target = $region59
        $region56: #{custom-call.4} parent=44 // loop_body
          %v438 = vld [vmem:[%s432] sm:$0xff]
          %439 = vst [vmem:[%s433] sm:$0xff] %v438
        $region57: #{custom-call.4} parent=44 // loop_footer
          %s440 = scalar_lea.vmem %s432, 8
          %s441 = scalar_lea.vmem %s433, 8
        $region58: #{custom-call.4} parent=44 // loop_footer_branch
          %442 = sbr.rel target = $region54
        $region59: #{custom-call.4} parent=44 // loop_exit
          _
      $region45: #{custom-call.4} parent=40 // pred_fallthru
        _
      %s444 = ssub.s32 1, 1
      %s445 = smul.u32 4, 8
      %s446 = scalar_lea.vmem %s1, %s445
      %s447 = smul.u32 4, 8
      %s448 = scalar_lea.vmem [#allocation1], %s447
      %v449 = vld [vmem:[%s448] sm:%s444]
      %450 = vst [vmem:[%s446] sm:%s444] %v449
    $region41: #{custom-call.4} parent=1 // pred_fallthru
      _
    // Predicated region
    $region60: #{custom-call.4} parent=1 // pred_check
      _
    $region61: #{custom-call.4} parent=1 // pred_check_branch
      %452 = sbr.rel (0) target = $region63
    $region62: #{custom-call.4} parent=1 // pred_region
      %454 = vsyncadd [#allocation4], 0
      %s456 = sshll.u32 [#allocation3], 4
      %s457 = int_to_ptr.vmem [resolvable:$true] %s456
      %s458 = sshll.u32 %s2, 4
      %s459 = int_to_ptr.hbm [resolvable:$true] %s458
      %461 = dma.vmem_to_hbm [thread:$0]  %s457, 16, %s459, [#allocation4]
    $region63: #{custom-call.4} parent=1 // pred_fallthru
      _
    // Predicated region
    $region64: #{custom-call.4} parent=1 // pred_check
      _
    $region65: #{custom-call.4} parent=1 // pred_check_branch
      %463 = sbr.rel (0) target = $region67
    $region66: #{custom-call.4} parent=1 // pred_region
      %465 = vsyncadd [#allocation7], 0
      %s467 = sshll.u32 [#allocation6], 4
      %s468 = int_to_ptr.vmem [resolvable:$true] %s467
      %s469 = sshll.u32 %s3, 4
      %s470 = int_to_ptr.hbm [resolvable:$true] %s469
      %472 = dma.vmem_to_hbm [thread:$0]  %s468, 16, %s470, [#allocation7]
    $region67: #{custom-call.4} parent=1 // pred_fallthru
      _
    // Predicated region
    $region68: #{custom-call.4} parent=1 // pred_check
      _
    $region69: #{custom-call.4} parent=1 // pred_check_branch
      %474 = sbr.rel (0) target = $region71
    $region70: #{custom-call.4} parent=1 // pred_region
      %476 = dma.done [#allocation4], 16
    $region71: #{custom-call.4} parent=1 // pred_fallthru
      _
    // Predicated region
    $region72: #{custom-call.4} parent=1 // pred_check
      _
    $region73: #{custom-call.4} parent=1 // pred_check_branch
      %478 = sbr.rel (0) target = $region75
    $region74: #{custom-call.4} parent=1 // pred_region
      %480 = dma.done [#allocation7], 16
    $region75: #{custom-call.4} parent=1 // pred_fallthru
      _
    %481 = vsyncpa [#allocation4], 1
    %482 = vsyncpa [#allocation7], 1

// kernel: mcr2_forward.1
$region0: #{mcr2_forward.1}
  #allocation0 [shape = 'u32[]', space=smem, size = 0x4, offset = 0x4, fixed_abs, tag = 'smem constant byte address 0x4 - core index']
  #allocation1 [shape = 'u32[72,128]{1,0:T(1,128)}', space=vmem, size = 0x9000, scoped, tag = 'internal scratch']
  #allocation2 [shape = 'f32[4,32,32]{2,1,0:T(8,128)}', space=vmem, size = 0x10000, scoped, tag = 'scratch operand']
  %s0 = inlined_call_operand.vmem [shape: f32[256,32], index: 0, kind: input, shape index: {}]
  %s1 = inlined_call_operand.vmem [shape: s32[256,1], index: 1, kind: input, shape index: {}]
  %s2 = inlined_call_operand.vmem [shape: f32[2,4,32,32], index: 2, kind: output, shape index: {}]
  %s3 = sld [smem:[#allocation0]]
  $region49: #{mcr2_forward.1} parent=0
    _
  %s5 = ssub.s32 1, %s3
  %s6 = scalar_select 0, %s5, %s3
  loop: start=0, step=1, limit=6
  $region2: #{mcr2_forward.1} parent=0 // loop_pre_header
    _
  $region3: #{mcr2_forward.1} parent=0 // loop_header
    %s8 = sphi 0, %s12
    %p9 = scmp.ge.s32.totalorder %s8, 6
    %s15 = sphi 0, %s27
    %s16 = sphi 0, %s23
    %s17 = sphi 0, %s15
    %s18 = sphi 0, %s16
    %s19 = sphi 0, %s17
    %s20 = sphi 0, %s18
    %s34 = sphi 0, %s36
    %s37 = sphi 0, %s34
    %s38 = sphi 0, %s37
    %s54 = sphi 0, %s38
    %s64 = sphi 0, %s66
    %s67 = sphi 0, %s64
    %s68 = sphi 0, %s67
    %s84 = sphi 0, %s68
    %s90 = sphi 0, %s92
    %s93 = sphi 0, %s90
    %s94 = sphi 0, %s93
    %s110 = sphi 0, %s94
  $region4: #{mcr2_forward.1} parent=0 // loop_header_branch
    %11 = sbr.rel (%p9) target = $region8
  $region5: #{mcr2_forward.1} parent=0 // loop_body
    %s13 = ssub.s32 %s8, 1
    %s14 = ssub.s32 %s8, 2
    %s21 = sadd.s32 1, %s16
    %p22 = scmp.ge.s32.totalorder %s21, 2
    %s23 = scalar_select %p22, 0, %s21
    %s24 = sadd.s32 1, %s15
    %s25 = scalar_select %p22, %s24, %s15
    %p26 = scmp.ge.s32.totalorder %s25, 2
    %s27 = scalar_select %p26, 0, %s25
    %s28 = smul.u32 %s15, 2
    %s29 = sadd.s32 %s28, %s16
    %s30 = smul.u32 %s27, 2
    %s31 = sadd.s32 %s30, %s23
    %s32 = ssub.s32 %s29, %s31
    %p33 = scmp.eq.s32.totalorder %s32, 0
    %s35 = sadd.s32 %s34, 1
    %s36 = scalar_select %p33, %s34, %s35
    %p39 = pneg %p33
    %p40 = scmp.eq.s32.totalorder %s8, 3
    %p41 = por %p39, %p40
    %p42 = scmp.ne.s32.totalorder %s34, %s37
    %p43 = scmp.eq.s32.totalorder %s8, 0
    %p44 = por %p42, %p43
    %p45 = scmp.ne.s32.totalorder %s34, %s37
    %p46 = scmp.eq.s32.totalorder %s13, 3
    %p47 = por %p45, %p46
    %p48 = scmp.ne.s32.totalorder %s37, %s38
    %p49 = scmp.eq.s32.totalorder %s13, 0
    %p50 = por %p48, %p49
    %p51 = scmp.ne.s32.totalorder %s37, %s38
    %p52 = scmp.eq.s32.totalorder %s14, 3
    %p53 = por %p51, %p52
    %p55 = scmp.ne.s32.totalorder %s38, %s54
    %p56 = scmp.eq.s32.totalorder %s14, 0
    %p57 = por %p55, %p56
    %s58 = smul.u32 %s15, 2
    %s59 = sadd.s32 %s58, %s16
    %s60 = smul.u32 %s27, 2
    %s61 = sadd.s32 %s60, %s23
    %s62 = ssub.s32 %s59, %s61
    %p63 = scmp.eq.s32.totalorder %s62, 0
    %s65 = sadd.s32 %s64, 1
    %s66 = scalar_select %p63, %s64, %s65
    %p69 = pneg %p63
    %p70 = scmp.eq.s32.totalorder %s8, 3
    %p71 = por %p69, %p70
    %p72 = scmp.ne.s32.totalorder %s64, %s67
    %p73 = scmp.eq.s32.totalorder %s8, 0
    %p74 = por %p72, %p73
    %p75 = scmp.ne.s32.totalorder %s64, %s67
    %p76 = scmp.eq.s32.totalorder %s13, 3
    %p77 = por %p75, %p76
    %p78 = scmp.ne.s32.totalorder %s67, %s68
    %p79 = scmp.eq.s32.totalorder %s13, 0
    %p80 = por %p78, %p79
    %p81 = scmp.ne.s32.totalorder %s67, %s68
    %p82 = scmp.eq.s32.totalorder %s14, 3
    %p83 = por %p81, %p82
    %p85 = scmp.ne.s32.totalorder %s68, %s84
    %p86 = scmp.eq.s32.totalorder %s14, 0
    %p87 = por %p85, %p86
    %s88 = ssub.s32 %s15, %s27
    %p89 = scmp.eq.s32.totalorder %s88, 0
    %s91 = sadd.s32 %s90, 1
    %s92 = scalar_select %p89, %s90, %s91
    %p95 = pneg %p89
    %p96 = scmp.eq.s32.totalorder %s8, 3
    %p97 = por %p95, %p96
    %p98 = scmp.ne.s32.totalorder %s90, %s93
    %p99 = scmp.eq.s32.totalorder %s8, 0
    %p100 = por %p98, %p99
    %p101 = scmp.ne.s32.totalorder %s90, %s93
    %p102 = scmp.eq.s32.totalorder %s13, 3
    %p103 = por %p101, %p102
    %p104 = scmp.ne.s32.totalorder %s93, %s94
    %p105 = scmp.eq.s32.totalorder %s13, 0
    %p106 = por %p104, %p105
    %p107 = scmp.ne.s32.totalorder %s93, %s94
    %p108 = scmp.eq.s32.totalorder %s14, 3
    %p109 = por %p107, %p108
    %p111 = scmp.ne.s32.totalorder %s94, %s110
    %p112 = scmp.eq.s32.totalorder %s14, 0
    %p113 = por %p111, %p112
    %p114 = scmp.le.s32.totalorder 1, %s8
    %p115 = scmp.lt.s32.totalorder %s8, 5
    %p116 = pnand %p114, %p115
    %p117 = pneg %p116
    // Predicated region
    $region9: #{mcr2_forward.1} parent=5 // pred_check
      _
    $region10: #{mcr2_forward.1} parent=5 // pred_check_branch
      %119 = sbr.rel (%p116) target = $region12
    $region11: #{mcr2_forward.1} parent=5 // pred_region
      %s120 = ssub.s32 %s8, 1
    $region12: #{mcr2_forward.1} parent=5 // pred_fallthru
      _
    %p121 = scmp.lt.s32.totalorder %s8, 4
    // Predicated region
    $region13: #{mcr2_forward.1} parent=5 // pred_check
      %p122 = pneg %p121
    $region14: #{mcr2_forward.1} parent=5 // pred_check_branch
      %124 = sbr.rel (%p122) target = $region16
    $region15: #{mcr2_forward.1} parent=5 // pred_region
      // Predicated region
      $region17: #{mcr2_forward.1} parent=15 // pred_check
        %p125 = pneg %p44
      $region18: #{mcr2_forward.1} parent=15 // pred_check_branch
        %127 = sbr.rel (%p125) target = $region20
      $region19: #{mcr2_forward.1} parent=15 // pred_region
        %s128 = smul.u32 %s15, 2
        %s129 = sadd.s32 %s128, %s16
        %s130 = smul.u32 8, %s129
        %p131 = scmp.lt.s32.totalorder %s130, 31
        %s132 = scalar_select %p131, %s130, 31
        %s133 = smul.addr %s132, 8
        %s134 = scalar_lea.vmem %s0, %s133
        %s135 = smul.u32 %s15, 2
        %s136 = sadd.s32 %s135, %s16
        %s137 = smul.u32 8, %s136
      $region20: #{mcr2_forward.1} parent=15 // pred_fallthru
        _
      // Predicated region
      $region21: #{mcr2_forward.1} parent=15 // pred_check
        %p138 = pneg %p74
      $region22: #{mcr2_forward.1} parent=15 // pred_check_branch
        %140 = sbr.rel (%p138) target = $region24
      $region23: #{mcr2_forward.1} parent=15 // pred_region
        %s141 = smul.u32 %s15, 2
        %s142 = sadd.s32 %s141, %s16
        %s143 = smul.u32 8, %s142
        %p144 = scmp.lt.s32.totalorder %s143, 31
        %s145 = scalar_select %p144, %s143, 31
        %s146 = smul.addr %s145, 8
        %s147 = scalar_lea.vmem %s1, %s146
        %s148 = smul.u32 %s15, 2
        %s149 = sadd.s32 %s148, %s16
        %s150 = smul.u32 8, %s149
      $region24: #{mcr2_forward.1} parent=15 // pred_fallthru
        _
    $region16: #{mcr2_forward.1} parent=5 // pred_fallthru
      _
    %p151 = scmp.le.s32.totalorder 1, %s8
    %p152 = scmp.lt.s32.totalorder %s8, 5
    %p153 = pnand %p151, %p152
    %p154 = pneg %p153
    // Predicated region
    $region25: #{mcr2_forward.1} parent=5 // pred_check
      _
    $region26: #{mcr2_forward.1} parent=5 // pred_check_branch
      %156 = sbr.rel (%p153) target = $region28
    $region27: #{mcr2_forward.1} parent=5 // pred_region
      %s157 = ssub.s32 %s8, 1
      %s158 = smul.u32 %s17, 2
      %s159 = sadd.s32 %s158, %s18
      %s160 = smul.u32 8, %s159
      %p161 = scmp.lt.s32.totalorder %s160, 31
      %s162 = scalar_select %p161, %s160, 31
      %s163 = smul.addr %s162, 8
      %s164 = scalar_lea.vmem %s0, %s163
      %p165 = pneg %p50
      %p166 = pneg %p47
      %s167 = smul.u32 %s17, 2
      %s168 = sadd.s32 %s167, %s18
      %s169 = smul.u32 8, %s168
      %p170 = scmp.lt.s32.totalorder %s169, 31
      %s171 = scalar_select %p170, %s169, 31
      %s172 = smul.addr %s171, 8
      %s173 = scalar_lea.vmem %s1, %s172
      %p174 = pneg %p80
      %p175 = pneg %p77
      %p176 = pneg %p106
      %p177 = pneg %p103
      %p178 = scmp.lt.s32.totalorder %s17, 1
      %s179 = scalar_select %p178, %s17, 1
      %s180 = smul.addr %s179, 16
      %s181 = smul.addr %s180, 8
      %s182 = scalar_lea.vmem %s2, %s181
      %s183 = smul.u32 %s17, 2
      %s184 = sadd.s32 %s183, %s18
      %s185 = smul.u32 8, %s184
      %p186 = scmp.lt.s32.totalorder %s185, 31
      %s187 = scalar_select %p186, %s185, 31
      %s188 = smul.addr %s187, 8
      %s189 = scalar_lea.vmem %s0, %s188
      %s190 = smul.u32 %s17, 2
      %s191 = sadd.s32 %s190, %s18
      %s192 = smul.u32 8, %s191
      %s193 = smul.u32 %s17, 2
      %s194 = sadd.s32 %s193, %s18
      %s195 = smul.u32 8, %s194
      %p196 = scmp.lt.s32.totalorder %s195, 31
      %s197 = scalar_select %p196, %s195, 31
      %s198 = smul.addr %s197, 8
      %s199 = scalar_lea.vmem %s1, %s198
      %s200 = smul.u32 %s17, 2
      %s201 = sadd.s32 %s200, %s18
      %s202 = smul.u32 8, %s201
      %p203 = scmp.lt.s32.totalorder %s17, 1
      %s204 = scalar_select %p203, %s17, 1
      %s205 = smul.addr %s204, 16
      %s206 = smul.addr %s205, 8
      %s207 = scalar_lea.vmem %s2, %s206
      %p208 = scmp.eq.s32.totalorder %s18, 0
      // Predicated region
      $region29: #{mcr2_forward.1} parent=27 // pred_check
        %p209 = pneg %p208
      $region30: #{mcr2_forward.1} parent=27 // pred_check_branch
        %211 = sbr.rel (%p209) target = $region32
      $region31: #{mcr2_forward.1} parent=27 // pred_region
        %vm212 = vcmask 261120
        %213 = vst.msk [vmem:[#allocation2] sm:$0xff] %vm212, 0.0
        %214 = vst.msk [vmem:[#allocation2 + $0x8] sm:$0xff] %vm212, 0.0
        %215 = vst.msk [vmem:[#allocation2 + $0x10] sm:$0xff] %vm212, 0.0
        %216 = vst.msk [vmem:[#allocation2 + $0x18] sm:$0xff] %vm212, 0.0
        %217 = vst.msk [vmem:[#allocation2 + $0x20] sm:$0xff] %vm212, 0.0
        %218 = vst.msk [vmem:[#allocation2 + $0x28] sm:$0xff] %vm212, 0.0
        %219 = vst.msk [vmem:[#allocation2 + $0x30] sm:$0xff] %vm212, 0.0
        %220 = vst.msk [vmem:[#allocation2 + $0x38] sm:$0xff] %vm212, 0.0
        %221 = vst.msk [vmem:[#allocation2 + $0x40] sm:$0xff] %vm212, 0.0
        %222 = vst.msk [vmem:[#allocation2 + $0x48] sm:$0xff] %vm212, 0.0
        %223 = vst.msk [vmem:[#allocation2 + $0x50] sm:$0xff] %vm212, 0.0
        %224 = vst.msk [vmem:[#allocation2 + $0x58] sm:$0xff] %vm212, 0.0
        %225 = vst.msk [vmem:[#allocation2 + $0x60] sm:$0xff] %vm212, 0.0
        %226 = vst.msk [vmem:[#allocation2 + $0x68] sm:$0xff] %vm212, 0.0
        %227 = vst.msk [vmem:[#allocation2 + $0x70] sm:$0xff] %vm212, 0.0
        %228 = vst.msk [vmem:[#allocation2 + $0x78] sm:$0xff] %vm212, 0.0
      $region32: #{mcr2_forward.1} parent=27 // pred_fallthru
        _
      %v229 = vld [vmem:[%s189] sm:$0xff]
      %v230 = vld [vmem:[%s189 + $0x8] sm:$0xff]
      %v231 = vld [vmem:[%s189 + $0x10] sm:$0xff]
      %v232 = vld [vmem:[%s189 + $0x18] sm:$0xff]
      %v233 = vld [vmem:[%s189 + $0x20] sm:$0xff]
      %v234 = vld [vmem:[%s189 + $0x28] sm:$0xff]
      %v235 = vld [vmem:[%s189 + $0x30] sm:$0xff]
      %v236 = vld [vmem:[%s189 + $0x38] sm:$0xff]
      %v237 = vld [vmem:[%s199] sm:$0xff]
      %v238 = vld [vmem:[%s199 + $0x8] sm:$0xff]
      %v239 = vld [vmem:[%s199 + $0x10] sm:$0xff]
      %v240 = vld [vmem:[%s199 + $0x18] sm:$0xff]
      %v241 = vld [vmem:[%s199 + $0x20] sm:$0xff]
      %v242 = vld [vmem:[%s199 + $0x28] sm:$0xff]
      %v243 = vld [vmem:[%s199 + $0x30] sm:$0xff]
      %v244 = vld [vmem:[%s199 + $0x38] sm:$0xff]
      %vm245 = vcmp.eq.s32.totalorder %v237, 0
      %vm246 = vcmp.eq.s32.totalorder %v238, 0
      %vm247 = vcmp.eq.s32.totalorder %v239, 0
      %vm248 = vcmp.eq.s32.totalorder %v240, 0
      %vm249 = vcmp.eq.s32.totalorder %v241, 0
      %vm250 = vcmp.eq.s32.totalorder %v242, 0
      %vm251 = vcmp.eq.s32.totalorder %v243, 0
      %vm252 = vcmp.eq.s32.totalorder %v244, 0
      %v253 = vsel %vm245, 1, 0
      %v254 = vsel %vm246, 1, 0
      %v255 = vsel %vm247, 1, 0
      %v256 = vsel %vm248, 1, 0
      %v257 = vsel %vm249, 1, 0
      %v258 = vsel %vm250, 1, 0
      %v259 = vsel %vm251, 1, 0
      %v260 = vsel %vm252, 1, 0
      %v261 = vcvt.s32.f32 %v253
      %v262 = vcvt.s32.f32 %v254
      %v263 = vcvt.s32.f32 %v255
      %v264 = vcvt.s32.f32 %v256
      %v265 = vcvt.s32.f32 %v257
      %v266 = vcvt.s32.f32 %v258
      %v267 = vcvt.s32.f32 %v259
      %v268 = vcvt.s32.f32 %v260
      %270 = vset.pattern.permute.xlu0 0
      %271 = vperm.xlu0 %270, %v261
      %v272 = vpop.permute.xlu0 %271
      %275 = vset.pattern.permute.xlu0 0
      %276 = vperm.xlu0 %275, %v262
      %v277 = vpop.permute.xlu0 %276
      %280 = vset.pattern.permute.xlu0 0
      %281 = vperm.xlu0 %280, %v263
      %v282 = vpop.permute.xlu0 %281
      %285 = vset.pattern.permute.xlu0 0
      %286 = vperm.xlu0 %285, %v264
      %v287 = vpop.permute.xlu0 %286
      %290 = vset.pattern.permute.xlu0 0
      %291 = vperm.xlu0 %290, %v265
      %v292 = vpop.permute.xlu0 %291
      %295 = vset.pattern.permute.xlu0 0
      %296 = vperm.xlu0 %295, %v266
      %v297 = vpop.permute.xlu0 %296
      %300 = vset.pattern.permute.xlu0 0
      %301 = vperm.xlu0 %300, %v267
      %v302 = vpop.permute.xlu0 %301
      %305 = vset.pattern.permute.xlu0 0
      %306 = vperm.xlu0 %305, %v268
      %v307 = vpop.permute.xlu0 %306
      %v309 = vmul.f32 %v229, %v272
      %v310 = vmul.f32 %v230, %v277
      %v311 = vmul.f32 %v231, %v282
      %v312 = vmul.f32 %v232, %v287
      %v313 = vmul.f32 %v233, %v292
      %v314 = vmul.f32 %v234, %v297
      %v315 = vmul.f32 %v235, %v302
      %v316 = vmul.f32 %v236, %v307
      %v317 = vld [vmem:[#allocation2] sm:$0xff]
      %v318 = vld [vmem:[#allocation2 + $0x8] sm:$0xff]
      %v319 = vld [vmem:[#allocation2 + $0x10] sm:$0xff]
      %v320 = vld [vmem:[#allocation2 + $0x18] sm:$0xff]
      %321 = vxpose.xlu0.b32.start [1/16] %v309, 128
      %322 = vxpose.xlu0.b32.cont [2/16] %v310, 128
      %323 = vxpose.xlu0.b32.cont [3/16] %v311, 128
      %324 = vxpose.xlu0.b32.cont [4/16] %v312, 128
      %325 = vxpose.xlu0.b32.cont [5/16] %v313, 128
      %326 = vxpose.xlu0.b32.cont [6/16] %v314, 128
      %327 = vxpose.xlu0.b32.cont [7/16] %v315, 128
      %328 = vxpose.xlu0.b32.cont [8/16] %v316, 128
      %329 = vxpose.xlu0.b32.cont [9/16] 0.0, 128
      %330 = vxpose.xlu0.b32.cont [10/16] 0.0, 128
      %331 = vxpose.xlu0.b32.cont [11/16] 0.0, 128
      %332 = vxpose.xlu0.b32.cont [12/16] 0.0, 128
      %333 = vxpose.xlu0.b32.cont [13/16] 0.0, 128
      %334 = vxpose.xlu0.b32.cont [14/16] 0.0, 128
      %335 = vxpose.xlu0.b32.cont [15/16] 0.0, 128
      %336 = vxpose.xlu0.b32.end [16/16] 0.0, 128
      %v337 = vpop.trf.xlu0
      %v338 = vpop.trf.xlu0
      %v339 = vpop.trf.xlu0
      %v340 = vpop.trf.xlu0
      %v341 = vpop.trf.xlu0
      %v342 = vpop.trf.xlu0
      %v343 = vpop.trf.xlu0
      %v344 = vpop.trf.xlu0
      %v345 = vpop.trf.xlu0
      %v346 = vpop.trf.xlu0
      %v347 = vpop.trf.xlu0
      %v348 = vpop.trf.xlu0
      %v349 = vpop.trf.xlu0
      %v350 = vpop.trf.xlu0
      %v351 = vpop.trf.xlu0
      %v352 = vpop.trf.xlu0
      %vm353 = vcmask 523264
      %v355 = vsel %vm353, %v337, 0
      %v358 = vsel %vm353, %v338, 0
      %v361 = vsel %vm353, %v339, 0
      %v364 = vsel %vm353, %v340, 0
      %366 = vmatpush.msra.mxu0 0.0
      %367 = vmatpush.msra.mxu0 0.0
      %368 = vmatpush.msra.mxu0 0.0
      %369 = vmatpush.msra.mxu0 0.0
      %370 = vmatpush.msra.mxu0 0.0
      %371 = vmatpush.msra.mxu0 0.0
      %372 = vmatpush.msra.mxu0 0.0
      %373 = vmatpush.msra.mxu0 0.0
      %374 = vmatpush.msra.mxu0 %v236
      %375 = vmatpush.msra.mxu0 %v235
      %376 = vmatpush.msra.mxu0 %v234
      %377 = vmatpush.msra.mxu0 %v233
      %378 = vmatpush.msra.mxu0 %v232
      %379 = vmatpush.msra.mxu0 %v231
      %380 = vmatpush.msra.mxu0 %v230
      %381 = vmatpush.msra.mxu0 %v229
      %382 = vmatmul.f32.gmra.mxu0 %v355
      %v383 = vpop.f32.mrf.mxu0
      %v384 = vadd.f32 0.0, %v383
      %385 = vmatmul.f32.gmra.mxu0 %v358
      %v386 = vpop.f32.mrf.mxu0
      %v387 = vadd.f32 0.0, %v386
      %388 = vmatmul.f32.gmra.mxu0 %v361
      %v389 = vpop.f32.mrf.mxu0
      %v390 = vadd.f32 0.0, %v389
      %391 = vmatmul.f32.gmra.mxu0 %v364
      %v392 = vpop.f32.mrf.mxu0
      %v393 = vadd.f32 0.0, %v392
      %394 = vdwg.mxu0
      %v395 = vadd.f32 %v317, %v384
      %v396 = vadd.f32 %v318, %v387
      %v397 = vadd.f32 %v319, %v390
      %v398 = vadd.f32 %v320, %v393
      %vm399 = vcmask 261120
      %400 = vst.msk [vmem:[#allocation2] sm:$0xff] %vm399, %v395
      %401 = vst.msk [vmem:[#allocation2 + $0x8] sm:$0xff] %vm399, %v396
      %402 = vst.msk [vmem:[#allocation2 + $0x10] sm:$0xff] %vm399, %v397
      %403 = vst.msk [vmem:[#allocation2 + $0x18] sm:$0xff] %vm399, %v398
      %vm404 = vcmp.eq.s32.totalorder %v237, 1
      %vm405 = vcmp.eq.s32.totalorder %v238, 1
      %vm406 = vcmp.eq.s32.totalorder %v239, 1
      %vm407 = vcmp.eq.s32.totalorder %v240, 1
      %vm408 = vcmp.eq.s32.totalorder %v241, 1
      %vm409 = vcmp.eq.s32.totalorder %v242, 1
      %vm410 = vcmp.eq.s32.totalorder %v243, 1
      %vm411 = vcmp.eq.s32.totalorder %v244, 1
      %v412 = vsel %vm404, 1, 0
      %v413 = vsel %vm405, 1, 0
      %v414 = vsel %vm406, 1, 0
      %v415 = vsel %vm407, 1, 0
      %v416 = vsel %vm408, 1, 0
      %v417 = vsel %vm409, 1, 0
      %v418 = vsel %vm410, 1, 0
      %v419 = vsel %vm411, 1, 0
      %v420 = vcvt.s32.f32 %v412
      %v421 = vcvt.s32.f32 %v413
      %v422 = vcvt.s32.f32 %v414
      %v423 = vcvt.s32.f32 %v415
      %v424 = vcvt.s32.f32 %v416
      %v425 = vcvt.s32.f32 %v417
      %v426 = vcvt.s32.f32 %v418
      %v427 = vcvt.s32.f32 %v419
      %429 = vset.pattern.permute.xlu0 0
      %430 = vperm.xlu0 %429, %v420
      %v431 = vpop.permute.xlu0 %430
      %434 = vset.pattern.permute.xlu0 0
      %435 = vperm.xlu0 %434, %v421
      %v436 = vpop.permute.xlu0 %435
      %439 = vset.pattern.permute.xlu0 0
      %440 = vperm.xlu0 %439, %v422
      %v441 = vpop.permute.xlu0 %440
      %444 = vset.pattern.permute.xlu0 0
      %445 = vperm.xlu0 %444, %v423
      %v446 = vpop.permute.xlu0 %445
      %449 = vset.pattern.permute.xlu0 0
      %450 = vperm.xlu0 %449, %v424
      %v451 = vpop.permute.xlu0 %450
      %454 = vset.pattern.permute.xlu0 0
      %455 = vperm.xlu0 %454, %v425
      %v456 = vpop.permute.xlu0 %455
      %459 = vset.pattern.permute.xlu0 0
      %460 = vperm.xlu0 %459, %v426
      %v461 = vpop.permute.xlu0 %460
      %464 = vset.pattern.permute.xlu0 0
      %465 = vperm.xlu0 %464, %v427
      %v466 = vpop.permute.xlu0 %465
      %v468 = vmul.f32 %v229, %v431
      %v469 = vmul.f32 %v230, %v436
      %v470 = vmul.f32 %v231, %v441
      %v471 = vmul.f32 %v232, %v446
      %v472 = vmul.f32 %v233, %v451
      %v473 = vmul.f32 %v234, %v456
      %v474 = vmul.f32 %v235, %v461
      %v475 = vmul.f32 %v236, %v466
      %s476 = scalar_lea.vmem [#allocation2], 32
      %v477 = vld [vmem:[%s476] sm:$0xff]
      %v478 = vld [vmem:[%s476 + $0x8] sm:$0xff]
      %v479 = vld [vmem:[%s476 + $0x10] sm:$0xff]
      %v480 = vld [vmem:[%s476 + $0x18] sm:$0xff]
      %481 = vxpose.xlu0.b32.start [1/16] %v468, 128
      %482 = vxpose.xlu0.b32.cont [2/16] %v469, 128
      %483 = vxpose.xlu0.b32.cont [3/16] %v470, 128
      %484 = vxpose.xlu0.b32.cont [4/16] %v471, 128
      %485 = vxpose.xlu0.b32.cont [5/16] %v472, 128
      %486 = vxpose.xlu0.b32.cont [6/16] %v473, 128
      %487 = vxpose.xlu0.b32.cont [7/16] %v474, 128
      %488 = vxpose.xlu0.b32.cont [8/16] %v475, 128
      %489 = vxpose.xlu0.b32.cont [9/16] 0.0, 128
      %490 = vxpose.xlu0.b32.cont [10/16] 0.0, 128
      %491 = vxpose.xlu0.b32.cont [11/16] 0.0, 128
      %492 = vxpose.xlu0.b32.cont [12/16] 0.0, 128
      %493 = vxpose.xlu0.b32.cont [13/16] 0.0, 128
      %494 = vxpose.xlu0.b32.cont [14/16] 0.0, 128
      %495 = vxpose.xlu0.b32.cont [15/16] 0.0, 128
      %496 = vxpose.xlu0.b32.end [16/16] 0.0, 128
      %v497 = vpop.trf.xlu0
      %v498 = vpop.trf.xlu0
      %v499 = vpop.trf.xlu0
      %v500 = vpop.trf.xlu0
      %v501 = vpop.trf.xlu0
      %v502 = vpop.trf.xlu0
      %v503 = vpop.trf.xlu0
      %v504 = vpop.trf.xlu0
      %v505 = vpop.trf.xlu0
      %v506 = vpop.trf.xlu0
      %v507 = vpop.trf.xlu0
      %v508 = vpop.trf.xlu0
      %v509 = vpop.trf.xlu0
      %v510 = vpop.trf.xlu0
      %v511 = vpop.trf.xlu0
      %v512 = vpop.trf.xlu0
      %v514 = vsel %vm353, %v497, 0
      %v517 = vsel %vm353, %v498, 0
      %v520 = vsel %vm353, %v499, 0
      %v523 = vsel %vm353, %v500, 0
      %525 = vmatpush.msra.mxu0 0.0
      %526 = vmatpush.msra.mxu0 0.0
      %527 = vmatpush.msra.mxu0 0.0
      %528 = vmatpush.msra.mxu0 0.0
      %529 = vmatpush.msra.mxu0 0.0
      %530 = vmatpush.msra.mxu0 0.0
      %531 = vmatpush.msra.mxu0 0.0
      %532 = vmatpush.msra.mxu0 0.0
      %533 = vmatpush.msra.mxu0 %v236
      %534 = vmatpush.msra.mxu0 %v235
      %535 = vmatpush.msra.mxu0 %v234
      %536 = vmatpush.msra.mxu0 %v233
      %537 = vmatpush.msra.mxu0 %v232
      %538 = vmatpush.msra.mxu0 %v231
      %539 = vmatpush.msra.mxu0 %v230
      %540 = vmatpush.msra.mxu0 %v229
      %541 = vmatmul.f32.gmra.mxu0 %v514
      %v542 = vpop.f32.mrf.mxu0
      %v543 = vadd.f32 0.0, %v542
      %544 = vmatmul.f32.gmra.mxu0 %v517
      %v545 = vpop.f32.mrf.mxu0
      %v546 = vadd.f32 0.0, %v545
      %547 = vmatmul.f32.gmra.mxu0 %v520
      %v548 = vpop.f32.mrf.mxu0
      %v549 = vadd.f32 0.0, %v548
      %550 = vmatmul.f32.gmra.mxu0 %v523
      %v551 = vpop.f32.mrf.mxu0
      %v552 = vadd.f32 0.0, %v551
      %553 = vdwg.mxu0
      %v554 = vadd.f32 %v477, %v543
      %v555 = vadd.f32 %v478, %v546
      %v556 = vadd.f32 %v479, %v549
      %v557 = vadd.f32 %v480, %v552
      %558 = vst.msk [vmem:[%s476] sm:$0xff] %vm399, %v554
      %559 = vst.msk [vmem:[%s476 + $0x8] sm:$0xff] %vm399, %v555
      %560 = vst.msk [vmem:[%s476 + $0x10] sm:$0xff] %vm399, %v556
      %561 = vst.msk [vmem:[%s476 + $0x18] sm:$0xff] %vm399, %v557
      %vm562 = vcmp.eq.s32.totalorder %v237, 2
      %vm563 = vcmp.eq.s32.totalorder %v238, 2
      %vm564 = vcmp.eq.s32.totalorder %v239, 2
      %vm565 = vcmp.eq.s32.totalorder %v240, 2
      %vm566 = vcmp.eq.s32.totalorder %v241, 2
      %vm567 = vcmp.eq.s32.totalorder %v242, 2
      %vm568 = vcmp.eq.s32.totalorder %v243, 2
      %vm569 = vcmp.eq.s32.totalorder %v244, 2
      %v570 = vsel %vm562, 1, 0
      %v571 = vsel %vm563, 1, 0
      %v572 = vsel %vm564, 1, 0
      %v573 = vsel %vm565, 1, 0
      %v574 = vsel %vm566, 1, 0
      %v575 = vsel %vm567, 1, 0
      %v576 = vsel %vm568, 1, 0
      %v577 = vsel %vm569, 1, 0
      %v578 = vcvt.s32.f32 %v570
      %v579 = vcvt.s32.f32 %v571
      %v580 = vcvt.s32.f32 %v572
      %v581 = vcvt.s32.f32 %v573
      %v582 = vcvt.s32.f32 %v574
      %v583 = vcvt.s32.f32 %v575
      %v584 = vcvt.s32.f32 %v576
      %v585 = vcvt.s32.f32 %v577
      %587 = vset.pattern.permute.xlu0 0
      %588 = vperm.xlu0 %587, %v578
      %v589 = vpop.permute.xlu0 %588
      %592 = vset.pattern.permute.xlu0 0
      %593 = vperm.xlu0 %592, %v579
      %v594 = vpop.permute.xlu0 %593
      %597 = vset.pattern.permute.xlu0 0
      %598 = vperm.xlu0 %597, %v580
      %v599 = vpop.permute.xlu0 %598
      %602 = vset.pattern.permute.xlu0 0
      %603 = vperm.xlu0 %602, %v581
      %v604 = vpop.permute.xlu0 %603
      %607 = vset.pattern.permute.xlu0 0
      %608 = vperm.xlu0 %607, %v582
      %v609 = vpop.permute.xlu0 %608
      %612 = vset.pattern.permute.xlu0 0
      %613 = vperm.xlu0 %612, %v583
      %v614 = vpop.permute.xlu0 %613
      %617 = vset.pattern.permute.xlu0 0
      %618 = vperm.xlu0 %617, %v584
      %v619 = vpop.permute.xlu0 %618
      %622 = vset.pattern.permute.xlu0 0
      %623 = vperm.xlu0 %622, %v585
      %v624 = vpop.permute.xlu0 %623
      %v626 = vmul.f32 %v229, %v589
      %v627 = vmul.f32 %v230, %v594
      %v628 = vmul.f32 %v231, %v599
      %v629 = vmul.f32 %v232, %v604
      %v630 = vmul.f32 %v233, %v609
      %v631 = vmul.f32 %v234, %v614
      %v632 = vmul.f32 %v235, %v619
      %v633 = vmul.f32 %v236, %v624
      %s634 = scalar_lea.vmem [#allocation2], 64
      %v635 = vld [vmem:[%s634] sm:$0xff]
      %v636 = vld [vmem:[%s634 + $0x8] sm:$0xff]
      %v637 = vld [vmem:[%s634 + $0x10] sm:$0xff]
      %v638 = vld [vmem:[%s634 + $0x18] sm:$0xff]
      %639 = vxpose.xlu0.b32.start [1/16] %v626, 128
      %640 = vxpose.xlu0.b32.cont [2/16] %v627, 128
      %641 = vxpose.xlu0.b32.cont [3/16] %v628, 128
      %642 = vxpose.xlu0.b32.cont [4/16] %v629, 128
      %643 = vxpose.xlu0.b32.cont [5/16] %v630, 128
      %644 = vxpose.xlu0.b32.cont [6/16] %v631, 128
      %645 = vxpose.xlu0.b32.cont [7/16] %v632, 128
      %646 = vxpose.xlu0.b32.cont [8/16] %v633, 128
      %647 = vxpose.xlu0.b32.cont [9/16] 0.0, 128
      %648 = vxpose.xlu0.b32.cont [10/16] 0.0, 128
      %649 = vxpose.xlu0.b32.cont [11/16] 0.0, 128
      %650 = vxpose.xlu0.b32.cont [12/16] 0.0, 128
      %651 = vxpose.xlu0.b32.cont [13/16] 0.0, 128
      %652 = vxpose.xlu0.b32.cont [14/16] 0.0, 128
      %653 = vxpose.xlu0.b32.cont [15/16] 0.0, 128
      %654 = vxpose.xlu0.b32.end [16/16] 0.0, 128
      %v655 = vpop.trf.xlu0
      %v656 = vpop.trf.xlu0
      %v657 = vpop.trf.xlu0
      %v658 = vpop.trf.xlu0
      %v659 = vpop.trf.xlu0
      %v660 = vpop.trf.xlu0
      %v661 = vpop.trf.xlu0
      %v662 = vpop.trf.xlu0
      %v663 = vpop.trf.xlu0
      %v664 = vpop.trf.xlu0
      %v665 = vpop.trf.xlu0
      %v666 = vpop.trf.xlu0
      %v667 = vpop.trf.xlu0
      %v668 = vpop.trf.xlu0
      %v669 = vpop.trf.xlu0
      %v670 = vpop.trf.xlu0
      %v672 = vsel %vm353, %v655, 0
      %v675 = vsel %vm353, %v656, 0
      %v678 = vsel %vm353, %v657, 0
      %v681 = vsel %vm353, %v658, 0
      %683 = vmatpush.msra.mxu0 0.0
      %684 = vmatpush.msra.mxu0 0.0
      %685 = vmatpush.msra.mxu0 0.0
      %686 = vmatpush.msra.mxu0 0.0
      %687 = vmatpush.msra.mxu0 0.0
      %688 = vmatpush.msra.mxu0 0.0
      %689 = vmatpush.msra.mxu0 0.0
      %690 = vmatpush.msra.mxu0 0.0
      %691 = vmatpush.msra.mxu0 %v236
      %692 = vmatpush.msra.mxu0 %v235
      %693 = vmatpush.msra.mxu0 %v234
      %694 = vmatpush.msra.mxu0 %v233
      %695 = vmatpush.msra.mxu0 %v232
      %696 = vmatpush.msra.mxu0 %v231
      %697 = vmatpush.msra.mxu0 %v230
      %698 = vmatpush.msra.mxu0 %v229
      %699 = vmatmul.f32.gmra.mxu0 %v672
      %v700 = vpop.f32.mrf.mxu0
      %v701 = vadd.f32 0.0, %v700
      %702 = vmatmul.f32.gmra.mxu0 %v675
      %v703 = vpop.f32.mrf.mxu0
      %v704 = vadd.f32 0.0, %v703
      %705 = vmatmul.f32.gmra.mxu0 %v678
      %v706 = vpop.f32.mrf.mxu0
      %v707 = vadd.f32 0.0, %v706
      %708 = vmatmul.f32.gmra.mxu0 %v681
      %v709 = vpop.f32.mrf.mxu0
      %v710 = vadd.f32 0.0, %v709
      %711 = vdwg.mxu0
      %v712 = vadd.f32 %v635, %v701
      %v713 = vadd.f32 %v636, %v704
      %v714 = vadd.f32 %v637, %v707
      %v715 = vadd.f32 %v638, %v710
      %716 = vst.msk [vmem:[%s634] sm:$0xff] %vm399, %v712
      %717 = vst.msk [vmem:[%s634 + $0x8] sm:$0xff] %vm399, %v713
      %718 = vst.msk [vmem:[%s634 + $0x10] sm:$0xff] %vm399, %v714
      %719 = vst.msk [vmem:[%s634 + $0x18] sm:$0xff] %vm399, %v715
      %vm720 = vcmp.eq.s32.totalorder %v237, 3
      %vm721 = vcmp.eq.s32.totalorder %v238, 3
      %vm722 = vcmp.eq.s32.totalorder %v239, 3
      %vm723 = vcmp.eq.s32.totalorder %v240, 3
      %vm724 = vcmp.eq.s32.totalorder %v241, 3
      %vm725 = vcmp.eq.s32.totalorder %v242, 3
      %vm726 = vcmp.eq.s32.totalorder %v243, 3
      %vm727 = vcmp.eq.s32.totalorder %v244, 3
      %v728 = vsel %vm720, 1, 0
      %v729 = vsel %vm721, 1, 0
      %v730 = vsel %vm722, 1, 0
      %v731 = vsel %vm723, 1, 0
      %v732 = vsel %vm724, 1, 0
      %v733 = vsel %vm725, 1, 0
      %v734 = vsel %vm726, 1, 0
      %v735 = vsel %vm727, 1, 0
      %v736 = vcvt.s32.f32 %v728
      %v737 = vcvt.s32.f32 %v729
      %v738 = vcvt.s32.f32 %v730
      %v739 = vcvt.s32.f32 %v731
      %v740 = vcvt.s32.f32 %v732
      %v741 = vcvt.s32.f32 %v733
      %v742 = vcvt.s32.f32 %v734
      %v743 = vcvt.s32.f32 %v735
      %745 = vset.pattern.permute.xlu0 0
      %746 = vperm.xlu0 %745, %v736
      %v747 = vpop.permute.xlu0 %746
      %750 = vset.pattern.permute.xlu0 0
      %751 = vperm.xlu0 %750, %v737
      %v752 = vpop.permute.xlu0 %751
      %755 = vset.pattern.permute.xlu0 0
      %756 = vperm.xlu0 %755, %v738
      %v757 = vpop.permute.xlu0 %756
      %760 = vset.pattern.permute.xlu0 0
      %761 = vperm.xlu0 %760, %v739
      %v762 = vpop.permute.xlu0 %761
      %765 = vset.pattern.permute.xlu0 0
      %766 = vperm.xlu0 %765, %v740
      %v767 = vpop.permute.xlu0 %766
      %770 = vset.pattern.permute.xlu0 0
      %771 = vperm.xlu0 %770, %v741
      %v772 = vpop.permute.xlu0 %771
      %775 = vset.pattern.permute.xlu0 0
      %776 = vperm.xlu0 %775, %v742
      %v777 = vpop.permute.xlu0 %776
      %780 = vset.pattern.permute.xlu0 0
      %781 = vperm.xlu0 %780, %v743
      %v782 = vpop.permute.xlu0 %781
      %v784 = vmul.f32 %v229, %v747
      %v785 = vmul.f32 %v230, %v752
      %v786 = vmul.f32 %v231, %v757
      %v787 = vmul.f32 %v232, %v762
      %v788 = vmul.f32 %v233, %v767
      %v789 = vmul.f32 %v234, %v772
      %v790 = vmul.f32 %v235, %v777
      %v791 = vmul.f32 %v236, %v782
      %s792 = scalar_lea.vmem [#allocation2], 96
      %v793 = vld [vmem:[%s792] sm:$0xff]
      %v794 = vld [vmem:[%s792 + $0x8] sm:$0xff]
      %v795 = vld [vmem:[%s792 + $0x10] sm:$0xff]
      %v796 = vld [vmem:[%s792 + $0x18] sm:$0xff]
      %797 = vxpose.xlu0.b32.start [1/16] %v784, 128
      %798 = vxpose.xlu0.b32.cont [2/16] %v785, 128
      %799 = vxpose.xlu0.b32.cont [3/16] %v786, 128
      %800 = vxpose.xlu0.b32.cont [4/16] %v787, 128
      %801 = vxpose.xlu0.b32.cont [5/16] %v788, 128
      %802 = vxpose.xlu0.b32.cont [6/16] %v789, 128
      %803 = vxpose.xlu0.b32.cont [7/16] %v790, 128
      %804 = vxpose.xlu0.b32.cont [8/16] %v791, 128
      %805 = vxpose.xlu0.b32.cont [9/16] 0.0, 128
      %806 = vxpose.xlu0.b32.cont [10/16] 0.0, 128
      %807 = vxpose.xlu0.b32.cont [11/16] 0.0, 128
      %808 = vxpose.xlu0.b32.cont [12/16] 0.0, 128
      %809 = vxpose.xlu0.b32.cont [13/16] 0.0, 128
      %810 = vxpose.xlu0.b32.cont [14/16] 0.0, 128
      %811 = vxpose.xlu0.b32.cont [15/16] 0.0, 128
      %812 = vxpose.xlu0.b32.end [16/16] 0.0, 128
      %v813 = vpop.trf.xlu0
      %v814 = vpop.trf.xlu0
      %v815 = vpop.trf.xlu0
      %v816 = vpop.trf.xlu0
      %v817 = vpop.trf.xlu0
      %v818 = vpop.trf.xlu0
      %v819 = vpop.trf.xlu0
      %v820 = vpop.trf.xlu0
      %v821 = vpop.trf.xlu0
      %v822 = vpop.trf.xlu0
      %v823 = vpop.trf.xlu0
      %v824 = vpop.trf.xlu0
      %v825 = vpop.trf.xlu0
      %v826 = vpop.trf.xlu0
      %v827 = vpop.trf.xlu0
      %v828 = vpop.trf.xlu0
      %v830 = vsel %vm353, %v813, 0
      %v833 = vsel %vm353, %v814, 0
      %v836 = vsel %vm353, %v815, 0
      %v839 = vsel %vm353, %v816, 0
      %841 = vmatpush.msra.mxu0 0.0
      %842 = vmatpush.msra.mxu0 0.0
      %843 = vmatpush.msra.mxu0 0.0
      %844 = vmatpush.msra.mxu0 0.0
      %845 = vmatpush.msra.mxu0 0.0
      %846 = vmatpush.msra.mxu0 0.0
      %847 = vmatpush.msra.mxu0 0.0
      %848 = vmatpush.msra.mxu0 0.0
      %849 = vmatpush.msra.mxu0 %v236
      %850 = vmatpush.msra.mxu0 %v235
      %851 = vmatpush.msra.mxu0 %v234
      %852 = vmatpush.msra.mxu0 %v233
      %853 = vmatpush.msra.mxu0 %v232
      %854 = vmatpush.msra.mxu0 %v231
      %855 = vmatpush.msra.mxu0 %v230
      %856 = vmatpush.msra.mxu0 %v229
      %857 = vmatmul.f32.gmra.mxu0 %v830
      %v858 = vpop.f32.mrf.mxu0
      %v859 = vadd.f32 0.0, %v858
      %860 = vmatmul.f32.gmra.mxu0 %v833
      %v861 = vpop.f32.mrf.mxu0
      %v862 = vadd.f32 0.0, %v861
      %863 = vmatmul.f32.gmra.mxu0 %v836
      %v864 = vpop.f32.mrf.mxu0
      %v865 = vadd.f32 0.0, %v864
      %866 = vmatmul.f32.gmra.mxu0 %v839
      %v867 = vpop.f32.mrf.mxu0
      %v868 = vadd.f32 0.0, %v867
      %869 = vdwg.mxu0
      %v870 = vadd.f32 %v793, %v859
      %v871 = vadd.f32 %v794, %v862
      %v872 = vadd.f32 %v795, %v865
      %v873 = vadd.f32 %v796, %v868
      %874 = vst.msk [vmem:[%s792] sm:$0xff] %vm399, %v870
      %875 = vst.msk [vmem:[%s792 + $0x8] sm:$0xff] %vm399, %v871
      %876 = vst.msk [vmem:[%s792 + $0x10] sm:$0xff] %vm399, %v872
      %877 = vst.msk [vmem:[%s792 + $0x18] sm:$0xff] %vm399, %v873
      %p878 = scmp.eq.s32.totalorder %s18, 1
      // Predicated region
      $region33: #{mcr2_forward.1} parent=27 // pred_check
        %p879 = pneg %p878
      $region34: #{mcr2_forward.1} parent=27 // pred_check_branch
        %881 = sbr.rel (%p879) target = $region36
      $region35: #{mcr2_forward.1} parent=27 // pred_region
        %v882 = vld [vmem:[#allocation2] sm:$0xff]
        %v883 = vld [vmem:[#allocation2 + $0x8] sm:$0xff]
        %v884 = vld [vmem:[#allocation2 + $0x10] sm:$0xff]
        %v885 = vld [vmem:[#allocation2 + $0x18] sm:$0xff]
        %v886 = vld [vmem:[#allocation2 + $0x20] sm:$0xff]
        %v887 = vld [vmem:[#allocation2 + $0x28] sm:$0xff]
        %v888 = vld [vmem:[#allocation2 + $0x30] sm:$0xff]
        %v889 = vld [vmem:[#allocation2 + $0x38] sm:$0xff]
        %v890 = vld [vmem:[#allocation2 + $0x40] sm:$0xff]
        %v891 = vld [vmem:[#allocation2 + $0x48] sm:$0xff]
        %v892 = vld [vmem:[#allocation2 + $0x50] sm:$0xff]
        %v893 = vld [vmem:[#allocation2 + $0x58] sm:$0xff]
        %v894 = vld [vmem:[#allocation2 + $0x60] sm:$0xff]
        %v895 = vld [vmem:[#allocation2 + $0x68] sm:$0xff]
        %v896 = vld [vmem:[#allocation2 + $0x70] sm:$0xff]
        %v897 = vld [vmem:[#allocation2 + $0x78] sm:$0xff]
        %898 = vst.msk [vmem:[%s207] sm:$0xff] %vm399, %v882
        %899 = vst.msk [vmem:[%s207 + $0x8] sm:$0xff] %vm399, %v883
        %900 = vst.msk [vmem:[%s207 + $0x10] sm:$0xff] %vm399, %v884
        %901 = vst.msk [vmem:[%s207 + $0x18] sm:$0xff] %vm399, %v885
        %902 = vst.msk [vmem:[%s207 + $0x20] sm:$0xff] %vm399, %v886
        %903 = vst.msk [vmem:[%s207 + $0x28] sm:$0xff] %vm399, %v887
        %904 = vst.msk [vmem:[%s207 + $0x30] sm:$0xff] %vm399, %v888
        %905 = vst.msk [vmem:[%s207 + $0x38] sm:$0xff] %vm399, %v889
        %906 = vst.msk [vmem:[%s207 + $0x40] sm:$0xff] %vm399, %v890
        %907 = vst.msk [vmem:[%s207 + $0x48] sm:$0xff] %vm399, %v891
        %908 = vst.msk [vmem:[%s207 + $0x50] sm:$0xff] %vm399, %v892
        %909 = vst.msk [vmem:[%s207 + $0x58] sm:$0xff] %vm399, %v893
        %910 = vst.msk [vmem:[%s207 + $0x60] sm:$0xff] %vm399, %v894
        %911 = vst.msk [vmem:[%s207 + $0x68] sm:$0xff] %vm399, %v895
        %912 = vst.msk [vmem:[%s207 + $0x70] sm:$0xff] %vm399, %v896
        %913 = vst.msk [vmem:[%s207 + $0x78] sm:$0xff] %vm399, %v897
      $region36: #{mcr2_forward.1} parent=27 // pred_fallthru
        _
      %p914 = scmp.lt.s32.totalorder %s17, 1
      %s915 = scalar_select %p914, %s17, 1
      %s916 = smul.addr %s915, 16
      %s917 = smul.addr %s916, 8
      %s918 = scalar_lea.vmem %s2, %s917
      // Predicated region
      $region37: #{mcr2_forward.1} parent=27 // pred_check
        %p919 = pneg %p103
      $region38: #{mcr2_forward.1} parent=27 // pred_check_branch
        %921 = sbr.rel (%p919) target = $region40
      $region39: #{mcr2_forward.1} parent=27 // pred_region
        _
      $region40: #{mcr2_forward.1} parent=27 // pred_fallthru
        _
    $region28: #{mcr2_forward.1} parent=5 // pred_fallthru
      _
    %p922 = scmp.le.s32.totalorder 2, %s8
    // Predicated region
    $region41: #{mcr2_forward.1} parent=5 // pred_check
      %p923 = pneg %p922
    $region42: #{mcr2_forward.1} parent=5 // pred_check_branch
      %925 = sbr.rel (%p923) target = $region44
    $region43: #{mcr2_forward.1} parent=5 // pred_region
      %s926 = ssub.s32 %s8, 2
      // Predicated region
      $region45: #{mcr2_forward.1} parent=43 // pred_check
        %p927 = pneg %p109
      $region46: #{mcr2_forward.1} parent=43 // pred_check_branch
        %929 = sbr.rel (%p927) target = $region48
      $region47: #{mcr2_forward.1} parent=43 // pred_region
        %p930 = scmp.lt.s32.totalorder %s19, 1
        %s931 = scalar_select %p930, %s19, 1
        %s932 = smul.addr %s931, 16
        %s933 = smul.addr %s932, 8
        %s934 = scalar_lea.vmem %s2, %s933
      $region48: #{mcr2_forward.1} parent=43 // pred_fallthru
        _
    $region44: #{mcr2_forward.1} parent=5 // pred_fallthru
      _
  $region6: #{mcr2_forward.1} parent=0 // loop_footer
    %s12 = sadd.s32 1, %s8
  $region7: #{mcr2_forward.1} parent=0 // loop_footer_branch
    %7 = sbr.rel target = $region3
  $region8: #{mcr2_forward.1} parent=0 // loop_exit
    _

</llo_original>
